<compile_context>
chip_gen: v6e
topology: v6e:2x2x1
jax: 0.10.0
libtpu: 0.0.40
codegen_flags: <defaults>
</compile_context>

<pallas_src>
import math

import jax
import jax.numpy as jnp
import numpy as np
from jax.experimental import pallas as pl
from jax.experimental.pallas import tpu as pltpu

D_MODEL = 32
N_HEADS = 4
HEAD_DIM = D_MODEL // N_HEADS
FFN_DIM = 64
LN_EPS = 1e-5
NEG_INF = -1e9


# ---------------------------------------------------------------------------
# In-kernel helpers (traced inside the Pallas kernel body)
# ---------------------------------------------------------------------------
def _layer_norm(x, w, b):
    mu = jnp.mean(x, axis=-1, keepdims=True)
    var = jnp.mean((x - mu) ** 2, axis=-1, keepdims=True)
    return (x - mu) * jax.lax.rsqrt(var + LN_EPS) * w + b


def _softmax(scores):
    scores = scores - jnp.max(scores, axis=-1, keepdims=True)
    p = jnp.exp(scores)
    return p * pl.reciprocal(jnp.sum(p, axis=-1, keepdims=True), approx=True)


def _erf(x):
    # Abramowitz & Stegun 7.1.26 rational approximation, |error| < 1.5e-7.
    # Uses only exp / mul / add / select so it lowers on v5e/v6e/v7x.
    a1, a2, a3, a4, a5 = 0.254829592, -0.284496736, 1.421413741, -1.453152027, 1.061405429
    p = 0.3275911
    sgn = jnp.where(x >= 0.0, 1.0, -1.0)
    ax = jnp.abs(x)
    t = 1.0 / (1.0 + p * ax)
    poly = ((((a5 * t + a4) * t + a3) * t + a2) * t + a1) * t
    return sgn * (1.0 - poly * jnp.exp(-ax * ax))


def _gelu_exact(x):
    return 0.5 * x * (1.0 + _erf(x * (1.0 / math.sqrt(2.0))))


def _mha(q, k, v, mask):
    """Multi-head attention core for ONE batch element.

    q: (T, D) f32 (already scaled via pre-scaled q weights), k/v: (S, D) f32,
    mask: (T, S) additive f32. Returns the lane-concatenated context (T, D) f32
    so the caller applies the out-projection with a single matmul.
    """
    ctxs = []
    for h in range(N_HEADS):                      # static unroll over heads
        sl = slice(h * HEAD_DIM, (h + 1) * HEAD_DIM)
        qh = q[:, sl].astype(jnp.bfloat16)
        kh = k[:, sl].astype(jnp.bfloat16)
        vh = v[:, sl].astype(jnp.bfloat16)
        s = jax.lax.dot_general(qh, kh, (((1,), (1,)), ((), ())),
                                preferred_element_type=jnp.float32) + mask
        p = _softmax(s).astype(jnp.bfloat16)
        ctxs.append(jnp.dot(p, vh, preferred_element_type=jnp.float32))   # (T, hd)
    # All four contexts live in adjacent lanes of one vreg at D=32 -> cheap concat.
    return jnp.concatenate(ctxs, axis=-1)         # (T, D)


# ---------------------------------------------------------------------------
# Pallas kernel: one decoder layer for ONE batch element per grid step
# ---------------------------------------------------------------------------
def decoder_layer_kernel(hs_ref, enc_ref, smask_ref, cmask_ref,
                         self_qkv_w_ref, self_out_w_ref,
                         cross_q_w_ref, cross_kv_w_ref, cross_out_w_ref,
                         fc1_w_ref, fc2_w_ref,
                         self_b_ref, cross_b_ref, fc_b_ref, ln_ref,
                         out_ref):
    hs = hs_ref[0]               # (T, D)  f32
    enc = enc_ref[0]             # (S, D)  f32
    smask = smask_ref[0]         # (T, T)  additive f32
    cmask = cmask_ref[0]         # (T, S)  additive f32

    self_b = self_b_ref[...]     # (1, 4D) f32: [bq*scale | bk | bv | bo]
    cross_b = cross_b_ref[...]   # (1, 4D) f32
    fc_b = fc_b_ref[...]         # (1, FFN_DIM + D) f32: [fc1_b | fc2_b]
    ln = ln_ref[...]             # (6, D)  f32: ln1_w; ln1_b; ln2_w; ln2_b; ln3_w; ln3_b

    # --- self attention block (single fused QKV matmul, single out-proj) ---
    residual = hs
    qkv = jnp.dot(hs.astype(jnp.bfloat16), self_qkv_w_ref[...],
                  preferred_element_type=jnp.float32) + self_b[:, :3 * D_MODEL]
    ctx = _mha(qkv[:, :D_MODEL], qkv[:, D_MODEL:2 * D_MODEL], qkv[:, 2 * D_MODEL:],
               smask)
    attn = jnp.dot(ctx.astype(jnp.bfloat16), self_out_w_ref[...],
                   preferred_element_type=jnp.float32) + self_b[:, 3 * D_MODEL:]
    hs = _layer_norm(residual + attn, ln[0:1, :], ln[1:2, :])

    # --- cross attention block (fused KV matmul on encoder states) ---
    residual = hs
    q = jnp.dot(hs.astype(jnp.bfloat16), cross_q_w_ref[...],
                preferred_element_type=jnp.float32) + cross_b[:, :D_MODEL]
    kv = jnp.dot(enc.astype(jnp.bfloat16), cross_kv_w_ref[...],
                 preferred_element_type=jnp.float32) + cross_b[:, D_MODEL:3 * D_MODEL]
    ctx = _mha(q, kv[:, :D_MODEL], kv[:, D_MODEL:], cmask)
    attn = jnp.dot(ctx.astype(jnp.bfloat16), cross_out_w_ref[...],
                   preferred_element_type=jnp.float32) + cross_b[:, 3 * D_MODEL:]
    hs = _layer_norm(residual + attn, ln[2:3, :], ln[3:4, :])

    # --- feed-forward block (exact erf GELU like torch F.gelu) ---
    residual = hs
    h = jnp.dot(hs.astype(jnp.bfloat16), fc1_w_ref[...],
                preferred_element_type=jnp.float32) + fc_b[:, :FFN_DIM]
    h = _gelu_exact(h)
    h = jnp.dot(h.astype(jnp.bfloat16), fc2_w_ref[...],
                preferred_element_type=jnp.float32) + fc_b[:, FFN_DIM:]
    hs = _layer_norm(residual + h, ln[4:5, :], ln[5:6, :])

    out_ref[0] = hs


# ---------------------------------------------------------------------------
# Host-side packing / wrapper
# ---------------------------------------------------------------------------
def _pack_params(params):
    """Pack the 26 per-tensor params (Linear weights pre-transposed (in,out),
    biases (1,out), LN params (1,D)) into 11 kernel arrays; bf16 weights,
    q weight/bias pre-scaled by head_dim**-0.5. No bf16 weight is ever sliced
    inside the kernel."""
    (s_wq, s_bq, s_wk, s_bk, s_wv, s_bv, s_wo, s_bo, ln1_w, ln1_b,
     c_wq, c_bq, c_wk, c_bk, c_wv, c_bv, c_wo, c_bo, ln2_w, ln2_b,
     fc1_w, fc1_b, fc2_w, fc2_b, ln3_w, ln3_b) = params
    scale = HEAD_DIM ** -0.5
    self_qkv_w = jnp.concatenate([s_wq * scale, s_wk, s_wv], axis=1).astype(jnp.bfloat16)
    self_b = jnp.concatenate([s_bq * scale, s_bk, s_bv, s_bo], axis=1).astype(jnp.float32)
    cross_q_w = (c_wq * scale).astype(jnp.bfloat16)
    cross_kv_w = jnp.concatenate([c_wk, c_wv], axis=1).astype(jnp.bfloat16)
    cross_b = jnp.concatenate([c_bq * scale, c_bk, c_bv, c_bo], axis=1).astype(jnp.float32)
    fc_b = jnp.concatenate([fc1_b, fc2_b], axis=1).astype(jnp.float32)
    ln = jnp.concatenate([ln1_w, ln1_b, ln2_w, ln2_b, ln3_w, ln3_b], axis=0).astype(jnp.float32)
    return (self_qkv_w, s_wo.astype(jnp.bfloat16),
            cross_q_w, cross_kv_w, c_wo.astype(jnp.bfloat16),
            fc1_w.astype(jnp.bfloat16), fc2_w.astype(jnp.bfloat16),
            self_b, cross_b, fc_b, ln)


def bart_decoder_layer(hidden_states, encoder_hidden_states,
                       attention_mask, encoder_attention_mask, params):
    B, T, D = hidden_states.shape
    S = encoder_hidden_states.shape[1]

    packed = _pack_params(params)
    smask = attention_mask[:, 0].astype(jnp.float32)            # (B, T, T)
    cmask = encoder_attention_mask[:, 0].astype(jnp.float32)    # (B, T, S)

    inputs = (hidden_states.astype(jnp.float32),
              encoder_hidden_states.astype(jnp.float32),
              smask, cmask) + packed

    const = lambda shape: pl.BlockSpec(shape, lambda b: tuple(0 for _ in shape))
    in_specs = [
        pl.BlockSpec((1, T, D), lambda b: (b, 0, 0)),        # hidden_states
        pl.BlockSpec((1, S, D), lambda b: (b, 0, 0)),        # encoder_hidden_states
        pl.BlockSpec((1, T, T), lambda b: (b, 0, 0)),        # self-attn mask
        pl.BlockSpec((1, T, S), lambda b: (b, 0, 0)),        # cross-attn mask
        const((D, 3 * D)),                                   # self qkv weight
        const((D, D)),                                       # self out weight
        const((D, D)),                                       # cross q weight
        const((D, 2 * D)),                                   # cross kv weight
        const((D, D)),                                       # cross out weight
        const((D, FFN_DIM)),                                 # fc1 weight
        const((FFN_DIM, D)),                                 # fc2 weight
        const((1, 4 * D)),                                   # self biases
        const((1, 4 * D)),                                   # cross biases
        const((1, FFN_DIM + D)),                             # fc biases
        const((6, D)),                                       # layer-norm params
    ]
    out_specs = pl.BlockSpec((1, T, D), lambda b: (b, 0, 0))

    flops = 2 * B * (
        T * D * 3 * D                           # self qkv proj
        + N_HEADS * T * T * HEAD_DIM * 2        # self scores + ctx
        + T * D * D                             # self out proj
        + T * D * D                             # cross q proj
        + S * D * 2 * D                         # cross kv proj
        + N_HEADS * T * S * HEAD_DIM * 2        # cross scores + ctx
        + T * D * D                             # cross out proj
        + T * D * FFN_DIM + T * FFN_DIM * D)    # ffn
    transcendentals = B * (N_HEADS * (T * T + T * S) + T * FFN_DIM + 3 * T)
    bytes_accessed = sum(int(np.prod(x.shape)) * x.dtype.itemsize for x in inputs)
    bytes_accessed += B * T * D * 4

    out = pl.pallas_call(
        decoder_layer_kernel,
        out_shape=jax.ShapeDtypeStruct((B, T, D), jnp.float32),
        grid=(B,),
        in_specs=in_specs,
        out_specs=out_specs,
        compiler_params=pltpu.CompilerParams(
            dimension_semantics=("parallel",)),
        cost_estimate=pl.CostEstimate(flops=flops,
                                      transcendentals=transcendentals,
                                      bytes_accessed=bytes_accessed),
    )(*inputs)
    return out


# ---------------------------------------------------------------------------
# Pure-JAX f32 reference (mirrors the PyTorch module, eval mode)
# ---------------------------------------------------------------------------
def ref_decoder_layer(hs, enc, self_mask, cross_mask, params):
    (s_wq, s_bq, s_wk, s_bk, s_wv, s_bv, s_wo, s_bo, ln1_w, ln1_b,
     c_wq, c_bq, c_wk, c_bk, c_wv, c_bv, c_wo, c_bo, ln2_w, ln2_b,
     fc1_w, fc1_b, fc2_w, fc2_b, ln3_w, ln3_b) = params

    def layer_norm(x, w, b):
        mu = x.mean(-1, keepdims=True)
        var = ((x - mu) ** 2).mean(-1, keepdims=True)
        return (x - mu) / jnp.sqrt(var + LN_EPS) * w + b

    def attn(x, kv, mask, wq, bq, wk, bk, wv, bv, wo, bo):
        B, T, _ = x.shape
        q = (x @ wq + bq) * HEAD_DIM ** -0.5
        k = kv @ wk + bk
        v = kv @ wv + bv
        split = lambda t: t.reshape(B, -1, N_HEADS, HEAD_DIM).transpose(0, 2, 1, 3)
        qh, kh, vh = split(q), split(k), split(v)
        s = jnp.einsum("bhtd,bhsd->bhts", qh, kh) + mask
        p = jax.nn.softmax(s, axis=-1)
        c = jnp.einsum("bhts,bhsd->bhtd", p, vh)
        c = c.transpose(0, 2, 1, 3).reshape(B, T, D_MODEL)
        return c @ wo + bo

    h = layer_norm(hs + attn(hs, hs, self_mask,
                             s_wq, s_bq, s_wk, s_bk, s_wv, s_bv, s_wo, s_bo),
                   ln1_w, ln1_b)
    h = layer_norm(h + attn(h, enc, cross_mask,
                            c_wq, c_bq, c_wk, c_bk, c_wv, c_bv, c_wo, c_bo),
                   ln2_w, ln2_b)
    f = jax.nn.gelu(h @ fc1_w + fc1_b, approximate=False) @ fc2_w + fc2_b
    return layer_norm(h + f, ln3_w, ln3_b)


# ---------------------------------------------------------------------------
# Main
# ---------------------------------------------------------------------------
if __name__ == "__main__":
    B, T, S = 2, 8, 16
    key = jax.random.PRNGKey(0)
    keys = iter(jax.random.split(key, 64))

    def dense(in_dim, out_dim):
        w = jax.random.normal(next(keys), (in_dim, out_dim), jnp.float32) * 0.02
        b = jax.random.normal(next(keys), (1, out_dim), jnp.float32) * 0.02
        return w, b

    # self-attn q/k/v/out, LN1, cross-attn q/k/v/out, LN2, fc1, fc2, LN3
    params = []
    for _ in range(4):                                  # self-attn projections
        params += list(dense(D_MODEL, D_MODEL))
    params += [jnp.ones((1, D_MODEL), jnp.float32), jnp.zeros((1, D_MODEL), jnp.float32)]
    for _ in range(4):                                  # cross-attn projections
        params += list(dense(D_MODEL, D_MODEL))
    params += [jnp.ones((1, D_MODEL), jnp.float32), jnp.zeros((1, D_MODEL), jnp.float32)]
    params += list(dense(D_MODEL, FFN_DIM))             # fc1
    params += list(dense(FFN_DIM, D_MODEL))             # fc2
    params += [jnp.ones((1, D_MODEL), jnp.float32), jnp.zeros((1, D_MODEL), jnp.float32)]
    params = tuple(params)

    hidden_states = jax.random.normal(next(keys), (B, T, D_MODEL), jnp.float32)
    encoder_hidden_states = jax.random.normal(next(keys), (B, S, D_MODEL), jnp.float32)

    # causal self-attention mask (additive, -1e9 above diagonal)
    causal = jnp.where(jnp.tril(jnp.ones((T, T), jnp.bool_)), 0.0, NEG_INF).astype(jnp.float32)
    attention_mask = jnp.broadcast_to(causal, (B, 1, T, T))
    # encoder padding mask: mask out last 3 encoder positions of batch element 1
    enc_pad = jnp.zeros((B, 1, T, S), jnp.float32)
    enc_pad = enc_pad.at[1, :, :, S - 3:].set(NEG_INF)
    encoder_attention_mask = enc_pad

    out = bart_decoder_layer(hidden_states, encoder_hidden_states,
                             attention_mask, encoder_attention_mask, params)
    out = jax.block_until_ready(out)

    ref = ref_decoder_layer(hidden_states, encoder_hidden_states,
                            attention_mask, encoder_attention_mask, params)
    # Tolerance allows for bf16 MXU operands + approx-reciprocal softmax
    # (the reference is pure f32).
    np.testing.assert_allclose(np.asarray(out), np.asarray(ref), rtol=1e-2, atol=1e-2)

    print("KERNEL_OK")
</pallas_src>

<mosaic_0001>
module attributes {stable_mosaic.version = 11 : i64} {
  func.func @decoder_layer_kernel(%arg0: i32, %arg1: memref<1x8x32xf32, #tpu.memory_space<vmem>>, %arg2: memref<1x16x32xf32, #tpu.memory_space<vmem>>, %arg3: memref<1x8x8xf32, #tpu.memory_space<vmem>>, %arg4: memref<1x8x16xf32, #tpu.memory_space<vmem>>, %arg5: memref<32x96xbf16, #tpu.memory_space<vmem>>, %arg6: memref<32x32xbf16, #tpu.memory_space<vmem>>, %arg7: memref<32x32xbf16, #tpu.memory_space<vmem>>, %arg8: memref<32x64xbf16, #tpu.memory_space<vmem>>, %arg9: memref<32x32xbf16, #tpu.memory_space<vmem>>, %arg10: memref<32x64xbf16, #tpu.memory_space<vmem>>, %arg11: memref<64x32xbf16, #tpu.memory_space<vmem>>, %arg12: memref<1x128xf32, #tpu.memory_space<vmem>>, %arg13: memref<1x128xf32, #tpu.memory_space<vmem>>, %arg14: memref<1x96xf32, #tpu.memory_space<vmem>>, %arg15: memref<6x32xf32, #tpu.memory_space<vmem>>, %arg16: memref<1x8x32xf32, #tpu.memory_space<vmem>>) attributes {dimension_semantics = [#tpu.dimension_semantics<parallel>], iteration_bounds = array<i64: 2>, scalar_prefetch = 0 : i64, scratch_operands = 0 : i64, tpu.core_type = #tpu.core_type<tc>, window_params = [{transform_indices = @transform_0, window_bounds = array<i64: 1, 8, 32>}, {transform_indices = @transform_1, window_bounds = array<i64: 1, 16, 32>}, {transform_indices = @transform_2, window_bounds = array<i64: 1, 8, 8>}, {transform_indices = @transform_3, window_bounds = array<i64: 1, 8, 16>}, {pipeline_mode = #tpu.pipeline_mode<synchronous>, transform_indices = @transform_4, window_bounds = array<i64: 32, 96>}, {pipeline_mode = #tpu.pipeline_mode<synchronous>, transform_indices = @transform_5, window_bounds = array<i64: 32, 32>}, {pipeline_mode = #tpu.pipeline_mode<synchronous>, transform_indices = @transform_6, window_bounds = array<i64: 32, 32>}, {pipeline_mode = #tpu.pipeline_mode<synchronous>, transform_indices = @transform_7, window_bounds = array<i64: 32, 64>}, {pipeline_mode = #tpu.pipeline_mode<synchronous>, transform_indices = @transform_8, window_bounds = array<i64: 32, 32>}, {pipeline_mode = #tpu.pipeline_mode<synchronous>, transform_indices = @transform_9, window_bounds = array<i64: 32, 64>}, {pipeline_mode = #tpu.pipeline_mode<synchronous>, transform_indices = @transform_10, window_bounds = array<i64: 64, 32>}, {pipeline_mode = #tpu.pipeline_mode<synchronous>, transform_indices = @transform_11, window_bounds = array<i64: 1, 128>}, {pipeline_mode = #tpu.pipeline_mode<synchronous>, transform_indices = @transform_12, window_bounds = array<i64: 1, 128>}, {pipeline_mode = #tpu.pipeline_mode<synchronous>, transform_indices = @transform_13, window_bounds = array<i64: 1, 96>}, {pipeline_mode = #tpu.pipeline_mode<synchronous>, transform_indices = @transform_14, window_bounds = array<i64: 6, 32>}, {transform_indices = @transform_15, window_bounds = array<i64: 1, 8, 32>}]} {
    %c0 = arith.constant 0 : index
    %c0_0 = arith.constant 0 : index
    %c0_1 = arith.constant 0 : index
    %0 = vector.load %arg1[%c0, %c0_0, %c0_1] : memref<1x8x32xf32, #tpu.memory_space<vmem>>, vector<1x8x32xf32>
    %1 = vector.shape_cast %0 : vector<1x8x32xf32> to vector<8x32xf32>
    %c0_2 = arith.constant 0 : index
    %c0_3 = arith.constant 0 : index
    %c0_4 = arith.constant 0 : index
    %2 = vector.load %arg2[%c0_2, %c0_3, %c0_4] : memref<1x16x32xf32, #tpu.memory_space<vmem>>, vector<1x16x32xf32>
    %3 = vector.shape_cast %2 : vector<1x16x32xf32> to vector<16x32xf32>
    %c0_5 = arith.constant 0 : index
    %c0_6 = arith.constant 0 : index
    %c0_7 = arith.constant 0 : index
    %4 = vector.load %arg3[%c0_5, %c0_6, %c0_7] : memref<1x8x8xf32, #tpu.memory_space<vmem>>, vector<1x8x8xf32>
    %5 = vector.shape_cast %4 : vector<1x8x8xf32> to vector<8x8xf32>
    %c0_8 = arith.constant 0 : index
    %c0_9 = arith.constant 0 : index
    %c0_10 = arith.constant 0 : index
    %6 = vector.load %arg4[%c0_8, %c0_9, %c0_10] : memref<1x8x16xf32, #tpu.memory_space<vmem>>, vector<1x8x16xf32>
    %7 = vector.shape_cast %6 : vector<1x8x16xf32> to vector<8x16xf32>
    %c0_11 = arith.constant 0 : index
    %c0_12 = arith.constant 0 : index
    %8 = vector.load %arg12[%c0_11, %c0_12] : memref<1x128xf32, #tpu.memory_space<vmem>>, vector<1x128xf32>
    %c0_13 = arith.constant 0 : index
    %c0_14 = arith.constant 0 : index
    %9 = vector.load %arg13[%c0_13, %c0_14] : memref<1x128xf32, #tpu.memory_space<vmem>>, vector<1x128xf32>
    %c0_15 = arith.constant 0 : index
    %c0_16 = arith.constant 0 : index
    %10 = vector.load %arg14[%c0_15, %c0_16] : memref<1x96xf32, #tpu.memory_space<vmem>>, vector<1x96xf32>
    %c0_17 = arith.constant 0 : index
    %c0_18 = arith.constant 0 : index
    %11 = vector.load %arg15[%c0_17, %c0_18] : memref<6x32xf32, #tpu.memory_space<vmem>>, vector<6x32xf32>
    %12 = arith.truncf %1 : vector<8x32xf32> to vector<8x32xbf16>
    %c0_19 = arith.constant 0 : index
    %c0_20 = arith.constant 0 : index
    %13 = vector.load %arg5[%c0_19, %c0_20] : memref<32x96xbf16, #tpu.memory_space<vmem>>, vector<32x96xbf16>
    %cst = arith.constant dense<0.000000e+00> : vector<8x96xf32>
    %14 = tpu.matmul %12, %13, %cst {dimension_numbers = #tpu.dot_dimension_numbers<[1], [0], [0], [1], [0, 0, 1, 1], [], []>} : vector<8x32xbf16>, vector<32x96xbf16>, vector<8x96xf32> -> vector<8x96xf32>
    %15 = vector.extract_strided_slice %8 {offsets = [0, 0], sizes = [1, 96], strides = [1, 1]} : vector<1x128xf32> to vector<1x96xf32>
    %16 = vector.broadcast %15 : vector<1x96xf32> to vector<8x96xf32>
    %17 = arith.addf %14, %16 : vector<8x96xf32>
    %18 = vector.extract_strided_slice %17 {offsets = [0, 0], sizes = [8, 32], strides = [1, 1]} : vector<8x96xf32> to vector<8x32xf32>
    %19 = vector.extract_strided_slice %17 {offsets = [0, 32], sizes = [8, 32], strides = [1, 1]} : vector<8x96xf32> to vector<8x32xf32>
    %20 = vector.extract_strided_slice %17 {offsets = [0, 64], sizes = [8, 32], strides = [1, 1]} : vector<8x96xf32> to vector<8x32xf32>
    %21 = vector.extract_strided_slice %18 {offsets = [0, 0], sizes = [8, 8], strides = [1, 1]} : vector<8x32xf32> to vector<8x8xf32>
    %22 = arith.truncf %21 : vector<8x8xf32> to vector<8x8xbf16>
    %23 = vector.extract_strided_slice %19 {offsets = [0, 0], sizes = [8, 8], strides = [1, 1]} : vector<8x32xf32> to vector<8x8xf32>
    %24 = arith.truncf %23 : vector<8x8xf32> to vector<8x8xbf16>
    %25 = vector.extract_strided_slice %20 {offsets = [0, 0], sizes = [8, 8], strides = [1, 1]} : vector<8x32xf32> to vector<8x8xf32>
    %26 = arith.truncf %25 : vector<8x8xf32> to vector<8x8xbf16>
    %cst_21 = arith.constant dense<0.000000e+00> : vector<8x8xf32>
    %27 = tpu.matmul %22, %24, %cst_21 {dimension_numbers = #tpu.dot_dimension_numbers<[1], [1], [0], [0], [0, 0, 1, 0], [], []>} : vector<8x8xbf16>, vector<8x8xbf16>, vector<8x8xf32> -> vector<8x8xf32>
    %28 = arith.addf %27, %5 : vector<8x8xf32>
    %cst_22 = arith.constant dense<0xFF800000> : vector<8xf32>
    %29 = vector.multi_reduction <maximumf>, %28, %cst_22 [1] : vector<8x8xf32> to vector<8xf32>
    %30 = vector.shape_cast %29 : vector<8xf32> to vector<8x1xf32>
    %31 = vector.broadcast %30 : vector<8x1xf32> to vector<8x8xf32>
    %32 = arith.subf %28, %31 : vector<8x8xf32>
    %33 = math.exp %32 : vector<8x8xf32>
    %cst_23 = arith.constant dense<0.000000e+00> : vector<8xf32>
    %34 = vector.multi_reduction <add>, %33, %cst_23 [1] : vector<8x8xf32> to vector<8xf32>
    %35 = vector.shape_cast %34 : vector<8xf32> to vector<8x1xf32>
    %36 = tpu.reciprocal %35 {approx = true} : vector<8x1xf32> -> vector<8x1xf32>
    %37 = vector.broadcast %36 : vector<8x1xf32> to vector<8x8xf32>
    %38 = arith.mulf %33, %37 : vector<8x8xf32>
    %39 = arith.truncf %38 : vector<8x8xf32> to vector<8x8xbf16>
    %cst_24 = arith.constant dense<0.000000e+00> : vector<8x8xf32>
    %40 = tpu.matmul %39, %26, %cst_24 {dimension_numbers = #tpu.dot_dimension_numbers<[1], [0], [0], [1], [0, 0, 1, 1], [], []>} : vector<8x8xbf16>, vector<8x8xbf16>, vector<8x8xf32> -> vector<8x8xf32>
    %41 = vector.extract_strided_slice %18 {offsets = [0, 8], sizes = [8, 8], strides = [1, 1]} : vector<8x32xf32> to vector<8x8xf32>
    %42 = arith.truncf %41 : vector<8x8xf32> to vector<8x8xbf16>
    %43 = vector.extract_strided_slice %19 {offsets = [0, 8], sizes = [8, 8], strides = [1, 1]} : vector<8x32xf32> to vector<8x8xf32>
    %44 = arith.truncf %43 : vector<8x8xf32> to vector<8x8xbf16>
    %45 = vector.extract_strided_slice %20 {offsets = [0, 8], sizes = [8, 8], strides = [1, 1]} : vector<8x32xf32> to vector<8x8xf32>
    %46 = arith.truncf %45 : vector<8x8xf32> to vector<8x8xbf16>
    %cst_25 = arith.constant dense<0.000000e+00> : vector<8x8xf32>
    %47 = tpu.matmul %42, %44, %cst_25 {dimension_numbers = #tpu.dot_dimension_numbers<[1], [1], [0], [0], [0, 0, 1, 0], [], []>} : vector<8x8xbf16>, vector<8x8xbf16>, vector<8x8xf32> -> vector<8x8xf32>
    %48 = arith.addf %47, %5 : vector<8x8xf32>
    %cst_26 = arith.constant dense<0xFF800000> : vector<8xf32>
    %49 = vector.multi_reduction <maximumf>, %48, %cst_26 [1] : vector<8x8xf32> to vector<8xf32>
    %50 = vector.shape_cast %49 : vector<8xf32> to vector<8x1xf32>
    %51 = vector.broadcast %50 : vector<8x1xf32> to vector<8x8xf32>
    %52 = arith.subf %48, %51 : vector<8x8xf32>
    %53 = math.exp %52 : vector<8x8xf32>
    %cst_27 = arith.constant dense<0.000000e+00> : vector<8xf32>
    %54 = vector.multi_reduction <add>, %53, %cst_27 [1] : vector<8x8xf32> to vector<8xf32>
    %55 = vector.shape_cast %54 : vector<8xf32> to vector<8x1xf32>
    %56 = tpu.reciprocal %55 {approx = true} : vector<8x1xf32> -> vector<8x1xf32>
    %57 = vector.broadcast %56 : vector<8x1xf32> to vector<8x8xf32>
    %58 = arith.mulf %53, %57 : vector<8x8xf32>
    %59 = arith.truncf %58 : vector<8x8xf32> to vector<8x8xbf16>
    %cst_28 = arith.constant dense<0.000000e+00> : vector<8x8xf32>
    %60 = tpu.matmul %59, %46, %cst_28 {dimension_numbers = #tpu.dot_dimension_numbers<[1], [0], [0], [1], [0, 0, 1, 1], [], []>} : vector<8x8xbf16>, vector<8x8xbf16>, vector<8x8xf32> -> vector<8x8xf32>
    %61 = vector.extract_strided_slice %18 {offsets = [0, 16], sizes = [8, 8], strides = [1, 1]} : vector<8x32xf32> to vector<8x8xf32>
    %62 = arith.truncf %61 : vector<8x8xf32> to vector<8x8xbf16>
    %63 = vector.extract_strided_slice %19 {offsets = [0, 16], sizes = [8, 8], strides = [1, 1]} : vector<8x32xf32> to vector<8x8xf32>
    %64 = arith.truncf %63 : vector<8x8xf32> to vector<8x8xbf16>
    %65 = vector.extract_strided_slice %20 {offsets = [0, 16], sizes = [8, 8], strides = [1, 1]} : vector<8x32xf32> to vector<8x8xf32>
    %66 = arith.truncf %65 : vector<8x8xf32> to vector<8x8xbf16>
    %cst_29 = arith.constant dense<0.000000e+00> : vector<8x8xf32>
    %67 = tpu.matmul %62, %64, %cst_29 {dimension_numbers = #tpu.dot_dimension_numbers<[1], [1], [0], [0], [0, 0, 1, 0], [], []>} : vector<8x8xbf16>, vector<8x8xbf16>, vector<8x8xf32> -> vector<8x8xf32>
    %68 = arith.addf %67, %5 : vector<8x8xf32>
    %cst_30 = arith.constant dense<0xFF800000> : vector<8xf32>
    %69 = vector.multi_reduction <maximumf>, %68, %cst_30 [1] : vector<8x8xf32> to vector<8xf32>
    %70 = vector.shape_cast %69 : vector<8xf32> to vector<8x1xf32>
    %71 = vector.broadcast %70 : vector<8x1xf32> to vector<8x8xf32>
    %72 = arith.subf %68, %71 : vector<8x8xf32>
    %73 = math.exp %72 : vector<8x8xf32>
    %cst_31 = arith.constant dense<0.000000e+00> : vector<8xf32>
    %74 = vector.multi_reduction <add>, %73, %cst_31 [1] : vector<8x8xf32> to vector<8xf32>
    %75 = vector.shape_cast %74 : vector<8xf32> to vector<8x1xf32>
    %76 = tpu.reciprocal %75 {approx = true} : vector<8x1xf32> -> vector<8x1xf32>
    %77 = vector.broadcast %76 : vector<8x1xf32> to vector<8x8xf32>
    %78 = arith.mulf %73, %77 : vector<8x8xf32>
    %79 = arith.truncf %78 : vector<8x8xf32> to vector<8x8xbf16>
    %cst_32 = arith.constant dense<0.000000e+00> : vector<8x8xf32>
    %80 = tpu.matmul %79, %66, %cst_32 {dimension_numbers = #tpu.dot_dimension_numbers<[1], [0], [0], [1], [0, 0, 1, 1], [], []>} : vector<8x8xbf16>, vector<8x8xbf16>, vector<8x8xf32> -> vector<8x8xf32>
    %81 = vector.extract_strided_slice %18 {offsets = [0, 24], sizes = [8, 8], strides = [1, 1]} : vector<8x32xf32> to vector<8x8xf32>
    %82 = arith.truncf %81 : vector<8x8xf32> to vector<8x8xbf16>
    %83 = vector.extract_strided_slice %19 {offsets = [0, 24], sizes = [8, 8], strides = [1, 1]} : vector<8x32xf32> to vector<8x8xf32>
    %84 = arith.truncf %83 : vector<8x8xf32> to vector<8x8xbf16>
    %85 = vector.extract_strided_slice %20 {offsets = [0, 24], sizes = [8, 8], strides = [1, 1]} : vector<8x32xf32> to vector<8x8xf32>
    %86 = arith.truncf %85 : vector<8x8xf32> to vector<8x8xbf16>
    %cst_33 = arith.constant dense<0.000000e+00> : vector<8x8xf32>
    %87 = tpu.matmul %82, %84, %cst_33 {dimension_numbers = #tpu.dot_dimension_numbers<[1], [1], [0], [0], [0, 0, 1, 0], [], []>} : vector<8x8xbf16>, vector<8x8xbf16>, vector<8x8xf32> -> vector<8x8xf32>
    %88 = arith.addf %87, %5 : vector<8x8xf32>
    %cst_34 = arith.constant dense<0xFF800000> : vector<8xf32>
    %89 = vector.multi_reduction <maximumf>, %88, %cst_34 [1] : vector<8x8xf32> to vector<8xf32>
    %90 = vector.shape_cast %89 : vector<8xf32> to vector<8x1xf32>
    %91 = vector.broadcast %90 : vector<8x1xf32> to vector<8x8xf32>
    %92 = arith.subf %88, %91 : vector<8x8xf32>
    %93 = math.exp %92 : vector<8x8xf32>
    %cst_35 = arith.constant dense<0.000000e+00> : vector<8xf32>
    %94 = vector.multi_reduction <add>, %93, %cst_35 [1] : vector<8x8xf32> to vector<8xf32>
    %95 = vector.shape_cast %94 : vector<8xf32> to vector<8x1xf32>
    %96 = tpu.reciprocal %95 {approx = true} : vector<8x1xf32> -> vector<8x1xf32>
    %97 = vector.broadcast %96 : vector<8x1xf32> to vector<8x8xf32>
    %98 = arith.mulf %93, %97 : vector<8x8xf32>
    %99 = arith.truncf %98 : vector<8x8xf32> to vector<8x8xbf16>
    %cst_36 = arith.constant dense<0.000000e+00> : vector<8x8xf32>
    %100 = tpu.matmul %99, %86, %cst_36 {dimension_numbers = #tpu.dot_dimension_numbers<[1], [0], [0], [1], [0, 0, 1, 1], [], []>} : vector<8x8xbf16>, vector<8x8xbf16>, vector<8x8xf32> -> vector<8x8xf32>
    %101 = tpu.concatenate %40, %60, %80, %100 in 1 : vector<8x8xf32>, vector<8x8xf32>, vector<8x8xf32>, vector<8x8xf32> -> vector<8x32xf32>
    %102 = arith.truncf %101 : vector<8x32xf32> to vector<8x32xbf16>
    %c0_37 = arith.constant 0 : index
    %c0_38 = arith.constant 0 : index
    %103 = vector.load %arg6[%c0_37, %c0_38] : memref<32x32xbf16, #tpu.memory_space<vmem>>, vector<32x32xbf16>
    %cst_39 = arith.constant dense<0.000000e+00> : vector<8x32xf32>
    %104 = tpu.matmul %102, %103, %cst_39 {dimension_numbers = #tpu.dot_dimension_numbers<[1], [0], [0], [1], [0, 0, 1, 1], [], []>} : vector<8x32xbf16>, vector<32x32xbf16>, vector<8x32xf32> -> vector<8x32xf32>
    %105 = vector.extract_strided_slice %8 {offsets = [0, 96], sizes = [1, 32], strides = [1, 1]} : vector<1x128xf32> to vector<1x32xf32>
    %106 = vector.broadcast %105 : vector<1x32xf32> to vector<8x32xf32>
    %107 = arith.addf %104, %106 : vector<8x32xf32>
    %108 = arith.addf %1, %107 : vector<8x32xf32>
    %109 = vector.extract_strided_slice %11 {offsets = [0, 0], sizes = [1, 32], strides = [1, 1]} : vector<6x32xf32> to vector<1x32xf32>
    %110 = vector.extract_strided_slice %11 {offsets = [1, 0], sizes = [1, 32], strides = [1, 1]} : vector<6x32xf32> to vector<1x32xf32>
    %cst_40 = arith.constant dense<0.000000e+00> : vector<8xf32>
    %111 = vector.multi_reduction <add>, %108, %cst_40 [1] : vector<8x32xf32> to vector<8xf32>
    %112 = vector.shape_cast %111 : vector<8xf32> to vector<8x1xf32>
    %cst_41 = arith.constant 3.200000e+01 : f32
    %113 = vector.broadcast %cst_41 : f32 to vector<8x1xf32>
    %114 = arith.divf %112, %113 : vector<8x1xf32>
    %115 = vector.broadcast %114 : vector<8x1xf32> to vector<8x32xf32>
    %116 = arith.subf %108, %115 : vector<8x32xf32>
    %117 = arith.mulf %116, %116 : vector<8x32xf32>
    %cst_42 = arith.constant dense<0.000000e+00> : vector<8xf32>
    %118 = vector.multi_reduction <add>, %117, %cst_42 [1] : vector<8x32xf32> to vector<8xf32>
    %119 = vector.shape_cast %118 : vector<8xf32> to vector<8x1xf32>
    %cst_43 = arith.constant 3.200000e+01 : f32
    %120 = vector.broadcast %cst_43 : f32 to vector<8x1xf32>
    %121 = arith.divf %119, %120 : vector<8x1xf32>
    %122 = vector.broadcast %114 : vector<8x1xf32> to vector<8x32xf32>
    %123 = arith.subf %108, %122 : vector<8x32xf32>
    %cst_44 = arith.constant 9.99999974E-6 : f32
    %124 = vector.broadcast %cst_44 : f32 to vector<8x1xf32>
    %125 = arith.addf %121, %124 : vector<8x1xf32>
    %126 = math.rsqrt %125 : vector<8x1xf32>
    %127 = vector.broadcast %126 : vector<8x1xf32> to vector<8x32xf32>
    %128 = arith.mulf %123, %127 : vector<8x32xf32>
    %129 = vector.broadcast %109 : vector<1x32xf32> to vector<8x32xf32>
    %130 = arith.mulf %128, %129 : vector<8x32xf32>
    %131 = vector.broadcast %110 : vector<1x32xf32> to vector<8x32xf32>
    %132 = arith.addf %130, %131 : vector<8x32xf32>
    %133 = arith.truncf %132 : vector<8x32xf32> to vector<8x32xbf16>
    %c0_45 = arith.constant 0 : index
    %c0_46 = arith.constant 0 : index
    %134 = vector.load %arg7[%c0_45, %c0_46] : memref<32x32xbf16, #tpu.memory_space<vmem>>, vector<32x32xbf16>
    %cst_47 = arith.constant dense<0.000000e+00> : vector<8x32xf32>
    %135 = tpu.matmul %133, %134, %cst_47 {dimension_numbers = #tpu.dot_dimension_numbers<[1], [0], [0], [1], [0, 0, 1, 1], [], []>} : vector<8x32xbf16>, vector<32x32xbf16>, vector<8x32xf32> -> vector<8x32xf32>
    %136 = vector.extract_strided_slice %9 {offsets = [0, 0], sizes = [1, 32], strides = [1, 1]} : vector<1x128xf32> to vector<1x32xf32>
    %137 = vector.broadcast %136 : vector<1x32xf32> to vector<8x32xf32>
    %138 = arith.addf %135, %137 : vector<8x32xf32>
    %139 = arith.truncf %3 : vector<16x32xf32> to vector<16x32xbf16>
    %c0_48 = arith.constant 0 : index
    %c0_49 = arith.constant 0 : index
    %140 = vector.load %arg8[%c0_48, %c0_49] : memref<32x64xbf16, #tpu.memory_space<vmem>>, vector<32x64xbf16>
    %cst_50 = arith.constant dense<0.000000e+00> : vector<16x64xf32>
    %141 = tpu.matmul %139, %140, %cst_50 {dimension_numbers = #tpu.dot_dimension_numbers<[1], [0], [0], [1], [0, 0, 1, 1], [], []>} : vector<16x32xbf16>, vector<32x64xbf16>, vector<16x64xf32> -> vector<16x64xf32>
    %142 = vector.extract_strided_slice %9 {offsets = [0, 32], sizes = [1, 64], strides = [1, 1]} : vector<1x128xf32> to vector<1x64xf32>
    %143 = vector.broadcast %142 : vector<1x64xf32> to vector<16x64xf32>
    %144 = arith.addf %141, %143 : vector<16x64xf32>
    %145 = vector.extract_strided_slice %144 {offsets = [0, 0], sizes = [16, 32], strides = [1, 1]} : vector<16x64xf32> to vector<16x32xf32>
    %146 = vector.extract_strided_slice %144 {offsets = [0, 32], sizes = [16, 32], strides = [1, 1]} : vector<16x64xf32> to vector<16x32xf32>
    %147 = vector.extract_strided_slice %138 {offsets = [0, 0], sizes = [8, 8], strides = [1, 1]} : vector<8x32xf32> to vector<8x8xf32>
    %148 = arith.truncf %147 : vector<8x8xf32> to vector<8x8xbf16>
    %149 = vector.extract_strided_slice %145 {offsets = [0, 0], sizes = [16, 8], strides = [1, 1]} : vector<16x32xf32> to vector<16x8xf32>
    %150 = arith.truncf %149 : vector<16x8xf32> to vector<16x8xbf16>
    %151 = vector.extract_strided_slice %146 {offsets = [0, 0], sizes = [16, 8], strides = [1, 1]} : vector<16x32xf32> to vector<16x8xf32>
    %152 = arith.truncf %151 : vector<16x8xf32> to vector<16x8xbf16>
    %cst_51 = arith.constant dense<0.000000e+00> : vector<8x16xf32>
    %153 = tpu.matmul %148, %150, %cst_51 {dimension_numbers = #tpu.dot_dimension_numbers<[1], [1], [0], [0], [0, 0, 1, 0], [], []>} : vector<8x8xbf16>, vector<16x8xbf16>, vector<8x16xf32> -> vector<8x16xf32>
    %154 = arith.addf %153, %7 : vector<8x16xf32>
    %cst_52 = arith.constant dense<0xFF800000> : vector<8xf32>
    %155 = vector.multi_reduction <maximumf>, %154, %cst_52 [1] : vector<8x16xf32> to vector<8xf32>
    %156 = vector.shape_cast %155 : vector<8xf32> to vector<8x1xf32>
    %157 = vector.broadcast %156 : vector<8x1xf32> to vector<8x16xf32>
    %158 = arith.subf %154, %157 : vector<8x16xf32>
    %159 = math.exp %158 : vector<8x16xf32>
    %cst_53 = arith.constant dense<0.000000e+00> : vector<8xf32>
    %160 = vector.multi_reduction <add>, %159, %cst_53 [1] : vector<8x16xf32> to vector<8xf32>
    %161 = vector.shape_cast %160 : vector<8xf32> to vector<8x1xf32>
    %162 = tpu.reciprocal %161 {approx = true} : vector<8x1xf32> -> vector<8x1xf32>
    %163 = vector.broadcast %162 : vector<8x1xf32> to vector<8x16xf32>
    %164 = arith.mulf %159, %163 : vector<8x16xf32>
    %165 = arith.truncf %164 : vector<8x16xf32> to vector<8x16xbf16>
    %cst_54 = arith.constant dense<0.000000e+00> : vector<8x8xf32>
    %166 = tpu.matmul %165, %152, %cst_54 {dimension_numbers = #tpu.dot_dimension_numbers<[1], [0], [0], [1], [0, 0, 1, 1], [], []>} : vector<8x16xbf16>, vector<16x8xbf16>, vector<8x8xf32> -> vector<8x8xf32>
    %167 = vector.extract_strided_slice %138 {offsets = [0, 8], sizes = [8, 8], strides = [1, 1]} : vector<8x32xf32> to vector<8x8xf32>
    %168 = arith.truncf %167 : vector<8x8xf32> to vector<8x8xbf16>
    %169 = vector.extract_strided_slice %145 {offsets = [0, 8], sizes = [16, 8], strides = [1, 1]} : vector<16x32xf32> to vector<16x8xf32>
    %170 = arith.truncf %169 : vector<16x8xf32> to vector<16x8xbf16>
    %171 = vector.extract_strided_slice %146 {offsets = [0, 8], sizes = [16, 8], strides = [1, 1]} : vector<16x32xf32> to vector<16x8xf32>
    %172 = arith.truncf %171 : vector<16x8xf32> to vector<16x8xbf16>
    %cst_55 = arith.constant dense<0.000000e+00> : vector<8x16xf32>
    %173 = tpu.matmul %168, %170, %cst_55 {dimension_numbers = #tpu.dot_dimension_numbers<[1], [1], [0], [0], [0, 0, 1, 0], [], []>} : vector<8x8xbf16>, vector<16x8xbf16>, vector<8x16xf32> -> vector<8x16xf32>
    %174 = arith.addf %173, %7 : vector<8x16xf32>
    %cst_56 = arith.constant dense<0xFF800000> : vector<8xf32>
    %175 = vector.multi_reduction <maximumf>, %174, %cst_56 [1] : vector<8x16xf32> to vector<8xf32>
    %176 = vector.shape_cast %175 : vector<8xf32> to vector<8x1xf32>
    %177 = vector.broadcast %176 : vector<8x1xf32> to vector<8x16xf32>
    %178 = arith.subf %174, %177 : vector<8x16xf32>
    %179 = math.exp %178 : vector<8x16xf32>
    %cst_57 = arith.constant dense<0.000000e+00> : vector<8xf32>
    %180 = vector.multi_reduction <add>, %179, %cst_57 [1] : vector<8x16xf32> to vector<8xf32>
    %181 = vector.shape_cast %180 : vector<8xf32> to vector<8x1xf32>
    %182 = tpu.reciprocal %181 {approx = true} : vector<8x1xf32> -> vector<8x1xf32>
    %183 = vector.broadcast %182 : vector<8x1xf32> to vector<8x16xf32>
    %184 = arith.mulf %179, %183 : vector<8x16xf32>
    %185 = arith.truncf %184 : vector<8x16xf32> to vector<8x16xbf16>
    %cst_58 = arith.constant dense<0.000000e+00> : vector<8x8xf32>
    %186 = tpu.matmul %185, %172, %cst_58 {dimension_numbers = #tpu.dot_dimension_numbers<[1], [0], [0], [1], [0, 0, 1, 1], [], []>} : vector<8x16xbf16>, vector<16x8xbf16>, vector<8x8xf32> -> vector<8x8xf32>
    %187 = vector.extract_strided_slice %138 {offsets = [0, 16], sizes = [8, 8], strides = [1, 1]} : vector<8x32xf32> to vector<8x8xf32>
    %188 = arith.truncf %187 : vector<8x8xf32> to vector<8x8xbf16>
    %189 = vector.extract_strided_slice %145 {offsets = [0, 16], sizes = [16, 8], strides = [1, 1]} : vector<16x32xf32> to vector<16x8xf32>
    %190 = arith.truncf %189 : vector<16x8xf32> to vector<16x8xbf16>
    %191 = vector.extract_strided_slice %146 {offsets = [0, 16], sizes = [16, 8], strides = [1, 1]} : vector<16x32xf32> to vector<16x8xf32>
    %192 = arith.truncf %191 : vector<16x8xf32> to vector<16x8xbf16>
    %cst_59 = arith.constant dense<0.000000e+00> : vector<8x16xf32>
    %193 = tpu.matmul %188, %190, %cst_59 {dimension_numbers = #tpu.dot_dimension_numbers<[1], [1], [0], [0], [0, 0, 1, 0], [], []>} : vector<8x8xbf16>, vector<16x8xbf16>, vector<8x16xf32> -> vector<8x16xf32>
    %194 = arith.addf %193, %7 : vector<8x16xf32>
    %cst_60 = arith.constant dense<0xFF800000> : vector<8xf32>
    %195 = vector.multi_reduction <maximumf>, %194, %cst_60 [1] : vector<8x16xf32> to vector<8xf32>
    %196 = vector.shape_cast %195 : vector<8xf32> to vector<8x1xf32>
    %197 = vector.broadcast %196 : vector<8x1xf32> to vector<8x16xf32>
    %198 = arith.subf %194, %197 : vector<8x16xf32>
    %199 = math.exp %198 : vector<8x16xf32>
    %cst_61 = arith.constant dense<0.000000e+00> : vector<8xf32>
    %200 = vector.multi_reduction <add>, %199, %cst_61 [1] : vector<8x16xf32> to vector<8xf32>
    %201 = vector.shape_cast %200 : vector<8xf32> to vector<8x1xf32>
    %202 = tpu.reciprocal %201 {approx = true} : vector<8x1xf32> -> vector<8x1xf32>
    %203 = vector.broadcast %202 : vector<8x1xf32> to vector<8x16xf32>
    %204 = arith.mulf %199, %203 : vector<8x16xf32>
    %205 = arith.truncf %204 : vector<8x16xf32> to vector<8x16xbf16>
    %cst_62 = arith.constant dense<0.000000e+00> : vector<8x8xf32>
    %206 = tpu.matmul %205, %192, %cst_62 {dimension_numbers = #tpu.dot_dimension_numbers<[1], [0], [0], [1], [0, 0, 1, 1], [], []>} : vector<8x16xbf16>, vector<16x8xbf16>, vector<8x8xf32> -> vector<8x8xf32>
    %207 = vector.extract_strided_slice %138 {offsets = [0, 24], sizes = [8, 8], strides = [1, 1]} : vector<8x32xf32> to vector<8x8xf32>
    %208 = arith.truncf %207 : vector<8x8xf32> to vector<8x8xbf16>
    %209 = vector.extract_strided_slice %145 {offsets = [0, 24], sizes = [16, 8], strides = [1, 1]} : vector<16x32xf32> to vector<16x8xf32>
    %210 = arith.truncf %209 : vector<16x8xf32> to vector<16x8xbf16>
    %211 = vector.extract_strided_slice %146 {offsets = [0, 24], sizes = [16, 8], strides = [1, 1]} : vector<16x32xf32> to vector<16x8xf32>
    %212 = arith.truncf %211 : vector<16x8xf32> to vector<16x8xbf16>
    %cst_63 = arith.constant dense<0.000000e+00> : vector<8x16xf32>
    %213 = tpu.matmul %208, %210, %cst_63 {dimension_numbers = #tpu.dot_dimension_numbers<[1], [1], [0], [0], [0, 0, 1, 0], [], []>} : vector<8x8xbf16>, vector<16x8xbf16>, vector<8x16xf32> -> vector<8x16xf32>
    %214 = arith.addf %213, %7 : vector<8x16xf32>
    %cst_64 = arith.constant dense<0xFF800000> : vector<8xf32>
    %215 = vector.multi_reduction <maximumf>, %214, %cst_64 [1] : vector<8x16xf32> to vector<8xf32>
    %216 = vector.shape_cast %215 : vector<8xf32> to vector<8x1xf32>
    %217 = vector.broadcast %216 : vector<8x1xf32> to vector<8x16xf32>
    %218 = arith.subf %214, %217 : vector<8x16xf32>
    %219 = math.exp %218 : vector<8x16xf32>
    %cst_65 = arith.constant dense<0.000000e+00> : vector<8xf32>
    %220 = vector.multi_reduction <add>, %219, %cst_65 [1] : vector<8x16xf32> to vector<8xf32>
    %221 = vector.shape_cast %220 : vector<8xf32> to vector<8x1xf32>
    %222 = tpu.reciprocal %221 {approx = true} : vector<8x1xf32> -> vector<8x1xf32>
    %223 = vector.broadcast %222 : vector<8x1xf32> to vector<8x16xf32>
    %224 = arith.mulf %219, %223 : vector<8x16xf32>
    %225 = arith.truncf %224 : vector<8x16xf32> to vector<8x16xbf16>
    %cst_66 = arith.constant dense<0.000000e+00> : vector<8x8xf32>
    %226 = tpu.matmul %225, %212, %cst_66 {dimension_numbers = #tpu.dot_dimension_numbers<[1], [0], [0], [1], [0, 0, 1, 1], [], []>} : vector<8x16xbf16>, vector<16x8xbf16>, vector<8x8xf32> -> vector<8x8xf32>
    %227 = tpu.concatenate %166, %186, %206, %226 in 1 : vector<8x8xf32>, vector<8x8xf32>, vector<8x8xf32>, vector<8x8xf32> -> vector<8x32xf32>
    %228 = arith.truncf %227 : vector<8x32xf32> to vector<8x32xbf16>
    %c0_67 = arith.constant 0 : index
    %c0_68 = arith.constant 0 : index
    %229 = vector.load %arg9[%c0_67, %c0_68] : memref<32x32xbf16, #tpu.memory_space<vmem>>, vector<32x32xbf16>
    %cst_69 = arith.constant dense<0.000000e+00> : vector<8x32xf32>
    %230 = tpu.matmul %228, %229, %cst_69 {dimension_numbers = #tpu.dot_dimension_numbers<[1], [0], [0], [1], [0, 0, 1, 1], [], []>} : vector<8x32xbf16>, vector<32x32xbf16>, vector<8x32xf32> -> vector<8x32xf32>
    %231 = vector.extract_strided_slice %9 {offsets = [0, 96], sizes = [1, 32], strides = [1, 1]} : vector<1x128xf32> to vector<1x32xf32>
    %232 = vector.broadcast %231 : vector<1x32xf32> to vector<8x32xf32>
    %233 = arith.addf %230, %232 : vector<8x32xf32>
    %234 = arith.addf %132, %233 : vector<8x32xf32>
    %235 = vector.extract_strided_slice %11 {offsets = [2, 0], sizes = [1, 32], strides = [1, 1]} : vector<6x32xf32> to vector<1x32xf32>
    %236 = vector.extract_strided_slice %11 {offsets = [3, 0], sizes = [1, 32], strides = [1, 1]} : vector<6x32xf32> to vector<1x32xf32>
    %cst_70 = arith.constant dense<0.000000e+00> : vector<8xf32>
    %237 = vector.multi_reduction <add>, %234, %cst_70 [1] : vector<8x32xf32> to vector<8xf32>
    %238 = vector.shape_cast %237 : vector<8xf32> to vector<8x1xf32>
    %cst_71 = arith.constant 3.200000e+01 : f32
    %239 = vector.broadcast %cst_71 : f32 to vector<8x1xf32>
    %240 = arith.divf %238, %239 : vector<8x1xf32>
    %241 = vector.broadcast %240 : vector<8x1xf32> to vector<8x32xf32>
    %242 = arith.subf %234, %241 : vector<8x32xf32>
    %243 = arith.mulf %242, %242 : vector<8x32xf32>
    %cst_72 = arith.constant dense<0.000000e+00> : vector<8xf32>
    %244 = vector.multi_reduction <add>, %243, %cst_72 [1] : vector<8x32xf32> to vector<8xf32>
    %245 = vector.shape_cast %244 : vector<8xf32> to vector<8x1xf32>
    %cst_73 = arith.constant 3.200000e+01 : f32
    %246 = vector.broadcast %cst_73 : f32 to vector<8x1xf32>
    %247 = arith.divf %245, %246 : vector<8x1xf32>
    %248 = vector.broadcast %240 : vector<8x1xf32> to vector<8x32xf32>
    %249 = arith.subf %234, %248 : vector<8x32xf32>
    %cst_74 = arith.constant 9.99999974E-6 : f32
    %250 = vector.broadcast %cst_74 : f32 to vector<8x1xf32>
    %251 = arith.addf %247, %250 : vector<8x1xf32>
    %252 = math.rsqrt %251 : vector<8x1xf32>
    %253 = vector.broadcast %252 : vector<8x1xf32> to vector<8x32xf32>
    %254 = arith.mulf %249, %253 : vector<8x32xf32>
    %255 = vector.broadcast %235 : vector<1x32xf32> to vector<8x32xf32>
    %256 = arith.mulf %254, %255 : vector<8x32xf32>
    %257 = vector.broadcast %236 : vector<1x32xf32> to vector<8x32xf32>
    %258 = arith.addf %256, %257 : vector<8x32xf32>
    %259 = arith.truncf %258 : vector<8x32xf32> to vector<8x32xbf16>
    %c0_75 = arith.constant 0 : index
    %c0_76 = arith.constant 0 : index
    %260 = vector.load %arg10[%c0_75, %c0_76] : memref<32x64xbf16, #tpu.memory_space<vmem>>, vector<32x64xbf16>
    %cst_77 = arith.constant dense<0.000000e+00> : vector<8x64xf32>
    %261 = tpu.matmul %259, %260, %cst_77 {dimension_numbers = #tpu.dot_dimension_numbers<[1], [0], [0], [1], [0, 0, 1, 1], [], []>} : vector<8x32xbf16>, vector<32x64xbf16>, vector<8x64xf32> -> vector<8x64xf32>
    %262 = vector.extract_strided_slice %10 {offsets = [0, 0], sizes = [1, 64], strides = [1, 1]} : vector<1x96xf32> to vector<1x64xf32>
    %263 = vector.broadcast %262 : vector<1x64xf32> to vector<8x64xf32>
    %264 = arith.addf %261, %263 : vector<8x64xf32>
    %cst_78 = arith.constant 5.000000e-01 : f32
    %265 = vector.broadcast %cst_78 : f32 to vector<8x64xf32>
    %266 = arith.mulf %265, %264 : vector<8x64xf32>
    %cst_79 = arith.constant 0.707106769 : f32
    %267 = vector.broadcast %cst_79 : f32 to vector<8x64xf32>
    %268 = arith.mulf %264, %267 : vector<8x64xf32>
    %cst_80 = arith.constant 0.000000e+00 : f32
    %269 = vector.broadcast %cst_80 : f32 to vector<8x64xf32>
    %270 = arith.cmpf oge, %268, %269 : vector<8x64xf32>
    %cst_81 = arith.constant 1.000000e+00 : f32
    %cst_82 = arith.constant -1.000000e+00 : f32
    %271 = vector.broadcast %cst_81 : f32 to vector<8x64xf32>
    %272 = vector.broadcast %cst_82 : f32 to vector<8x64xf32>
    %273 = arith.select %270, %271, %272 : vector<8x64xi1>, vector<8x64xf32>
    %274 = math.absf %268 : vector<8x64xf32>
    %cst_83 = arith.constant 0.327591091 : f32
    %275 = vector.broadcast %cst_83 : f32 to vector<8x64xf32>
    %276 = arith.mulf %275, %274 : vector<8x64xf32>
    %cst_84 = arith.constant 1.000000e+00 : f32
    %277 = vector.broadcast %cst_84 : f32 to vector<8x64xf32>
    %278 = arith.addf %277, %276 : vector<8x64xf32>
    %cst_85 = arith.constant 1.000000e+00 : f32
    %279 = vector.broadcast %cst_85 : f32 to vector<8x64xf32>
    %280 = arith.divf %279, %278 : vector<8x64xf32>
    %cst_86 = arith.constant 1.06140542 : f32
    %281 = vector.broadcast %cst_86 : f32 to vector<8x64xf32>
    %282 = arith.mulf %281, %280 : vector<8x64xf32>
    %cst_87 = arith.constant -1.45315206 : f32
    %283 = vector.broadcast %cst_87 : f32 to vector<8x64xf32>
    %284 = arith.addf %282, %283 : vector<8x64xf32>
    %285 = arith.mulf %284, %280 : vector<8x64xf32>
    %cst_88 = arith.constant 1.42141378 : f32
    %286 = vector.broadcast %cst_88 : f32 to vector<8x64xf32>
    %287 = arith.addf %285, %286 : vector<8x64xf32>
    %288 = arith.mulf %287, %280 : vector<8x64xf32>
    %cst_89 = arith.constant -0.284496725 : f32
    %289 = vector.broadcast %cst_89 : f32 to vector<8x64xf32>
    %290 = arith.addf %288, %289 : vector<8x64xf32>
    %291 = arith.mulf %290, %280 : vector<8x64xf32>
    %cst_90 = arith.constant 0.254829586 : f32
    %292 = vector.broadcast %cst_90 : f32 to vector<8x64xf32>
    %293 = arith.addf %291, %292 : vector<8x64xf32>
    %294 = arith.mulf %293, %280 : vector<8x64xf32>
    %cst_91 = arith.constant 0.000000e+00 : f32
    %295 = vector.broadcast %cst_91 : f32 to vector<8x64xf32>
    %296 = arith.subf %295, %274 : vector<8x64xf32>
    %297 = arith.mulf %296, %274 : vector<8x64xf32>
    %298 = math.exp %297 : vector<8x64xf32>
    %299 = arith.mulf %294, %298 : vector<8x64xf32>
    %cst_92 = arith.constant 1.000000e+00 : f32
    %300 = vector.broadcast %cst_92 : f32 to vector<8x64xf32>
    %301 = arith.subf %300, %299 : vector<8x64xf32>
    %302 = arith.mulf %273, %301 : vector<8x64xf32>
    %cst_93 = arith.constant 1.000000e+00 : f32
    %303 = vector.broadcast %cst_93 : f32 to vector<8x64xf32>
    %304 = arith.addf %303, %302 : vector<8x64xf32>
    %305 = arith.mulf %266, %304 : vector<8x64xf32>
    %306 = arith.truncf %305 : vector<8x64xf32> to vector<8x64xbf16>
    %c0_94 = arith.constant 0 : index
    %c0_95 = arith.constant 0 : index
    %307 = vector.load %arg11[%c0_94, %c0_95] : memref<64x32xbf16, #tpu.memory_space<vmem>>, vector<64x32xbf16>
    %cst_96 = arith.constant dense<0.000000e+00> : vector<8x32xf32>
    %308 = tpu.matmul %306, %307, %cst_96 {dimension_numbers = #tpu.dot_dimension_numbers<[1], [0], [0], [1], [0, 0, 1, 1], [], []>} : vector<8x64xbf16>, vector<64x32xbf16>, vector<8x32xf32> -> vector<8x32xf32>
    %309 = vector.extract_strided_slice %10 {offsets = [0, 64], sizes = [1, 32], strides = [1, 1]} : vector<1x96xf32> to vector<1x32xf32>
    %310 = vector.broadcast %309 : vector<1x32xf32> to vector<8x32xf32>
    %311 = arith.addf %308, %310 : vector<8x32xf32>
    %312 = arith.addf %258, %311 : vector<8x32xf32>
    %313 = vector.extract_strided_slice %11 {offsets = [4, 0], sizes = [1, 32], strides = [1, 1]} : vector<6x32xf32> to vector<1x32xf32>
    %314 = vector.extract_strided_slice %11 {offsets = [5, 0], sizes = [1, 32], strides = [1, 1]} : vector<6x32xf32> to vector<1x32xf32>
    %cst_97 = arith.constant dense<0.000000e+00> : vector<8xf32>
    %315 = vector.multi_reduction <add>, %312, %cst_97 [1] : vector<8x32xf32> to vector<8xf32>
    %316 = vector.shape_cast %315 : vector<8xf32> to vector<8x1xf32>
    %cst_98 = arith.constant 3.200000e+01 : f32
    %317 = vector.broadcast %cst_98 : f32 to vector<8x1xf32>
    %318 = arith.divf %316, %317 : vector<8x1xf32>
    %319 = vector.broadcast %318 : vector<8x1xf32> to vector<8x32xf32>
    %320 = arith.subf %312, %319 : vector<8x32xf32>
    %321 = arith.mulf %320, %320 : vector<8x32xf32>
    %cst_99 = arith.constant dense<0.000000e+00> : vector<8xf32>
    %322 = vector.multi_reduction <add>, %321, %cst_99 [1] : vector<8x32xf32> to vector<8xf32>
    %323 = vector.shape_cast %322 : vector<8xf32> to vector<8x1xf32>
    %cst_100 = arith.constant 3.200000e+01 : f32
    %324 = vector.broadcast %cst_100 : f32 to vector<8x1xf32>
    %325 = arith.divf %323, %324 : vector<8x1xf32>
    %326 = vector.broadcast %318 : vector<8x1xf32> to vector<8x32xf32>
    %327 = arith.subf %312, %326 : vector<8x32xf32>
    %cst_101 = arith.constant 9.99999974E-6 : f32
    %328 = vector.broadcast %cst_101 : f32 to vector<8x1xf32>
    %329 = arith.addf %325, %328 : vector<8x1xf32>
    %330 = math.rsqrt %329 : vector<8x1xf32>
    %331 = vector.broadcast %330 : vector<8x1xf32> to vector<8x32xf32>
    %332 = arith.mulf %327, %331 : vector<8x32xf32>
    %333 = vector.broadcast %313 : vector<1x32xf32> to vector<8x32xf32>
    %334 = arith.mulf %332, %333 : vector<8x32xf32>
    %335 = vector.broadcast %314 : vector<1x32xf32> to vector<8x32xf32>
    %336 = arith.addf %334, %335 : vector<8x32xf32>
    %c0_102 = arith.constant 0 : index
    %c0_103 = arith.constant 0 : index
    %c0_104 = arith.constant 0 : index
    %337 = vector.load %arg16[%c0_102, %c0_103, %c0_104] : memref<1x8x32xf32, #tpu.memory_space<vmem>>, vector<1x8x32xf32>
    %338 = vector.shape_cast %337 : vector<1x8x32xf32> to vector<8x32xf32>
    %339 = vector.shape_cast %336 : vector<8x32xf32> to vector<1x8x32xf32>
    tpu.vector_store %arg16[%c0_102, %c0_103, %c0_104], %339 {strides = array<i32>} : memref<1x8x32xf32, #tpu.memory_space<vmem>>, vector<1x8x32xf32>,
    return
  }
  func.func @transform_0(%arg0: i32) -> (i32, i32, i32) {
    %c0_i32 = arith.constant 0 : i32
    %c0_i32_0 = arith.constant 0 : i32
    %c0_i32_1 = arith.constant 0 : i32
    return %arg0, %c0_i32, %c0_i32_0 : i32, i32, i32
  }
  func.func @transform_1(%arg0: i32) -> (i32, i32, i32) {
    %c0_i32 = arith.constant 0 : i32
    %c0_i32_0 = arith.constant 0 : i32
    %c0_i32_1 = arith.constant 0 : i32
    return %arg0, %c0_i32, %c0_i32_0 : i32, i32, i32
  }
  func.func @transform_2(%arg0: i32) -> (i32, i32, i32) {
    %c0_i32 = arith.constant 0 : i32
    %c0_i32_0 = arith.constant 0 : i32
    %c0_i32_1 = arith.constant 0 : i32
    return %arg0, %c0_i32, %c0_i32_0 : i32, i32, i32
  }
  func.func @transform_3(%arg0: i32) -> (i32, i32, i32) {
    %c0_i32 = arith.constant 0 : i32
    %c0_i32_0 = arith.constant 0 : i32
    %c0_i32_1 = arith.constant 0 : i32
    return %arg0, %c0_i32, %c0_i32_0 : i32, i32, i32
  }
  func.func @transform_4(%arg0: i32) -> (i32, i32) {
    %c0_i32 = arith.constant 0 : i32
    %c0_i32_0 = arith.constant 0 : i32
    %c0_i32_1 = arith.constant 0 : i32
    return %c0_i32, %c0_i32_0 : i32, i32
  }
  func.func @transform_5(%arg0: i32) -> (i32, i32) {
    %c0_i32 = arith.constant 0 : i32
    %c0_i32_0 = arith.constant 0 : i32
    %c0_i32_1 = arith.constant 0 : i32
    return %c0_i32, %c0_i32_0 : i32, i32
  }
  func.func @transform_6(%arg0: i32) -> (i32, i32) {
    %c0_i32 = arith.constant 0 : i32
    %c0_i32_0 = arith.constant 0 : i32
    %c0_i32_1 = arith.constant 0 : i32
    return %c0_i32, %c0_i32_0 : i32, i32
  }
  func.func @transform_7(%arg0: i32) -> (i32, i32) {
    %c0_i32 = arith.constant 0 : i32
    %c0_i32_0 = arith.constant 0 : i32
    %c0_i32_1 = arith.constant 0 : i32
    return %c0_i32, %c0_i32_0 : i32, i32
  }
  func.func @transform_8(%arg0: i32) -> (i32, i32) {
    %c0_i32 = arith.constant 0 : i32
    %c0_i32_0 = arith.constant 0 : i32
    %c0_i32_1 = arith.constant 0 : i32
    return %c0_i32, %c0_i32_0 : i32, i32
  }
  func.func @transform_9(%arg0: i32) -> (i32, i32) {
    %c0_i32 = arith.constant 0 : i32
    %c0_i32_0 = arith.constant 0 : i32
    %c0_i32_1 = arith.constant 0 : i32
    return %c0_i32, %c0_i32_0 : i32, i32
  }
  func.func @transform_10(%arg0: i32) -> (i32, i32) {
    %c0_i32 = arith.constant 0 : i32
    %c0_i32_0 = arith.constant 0 : i32
    %c0_i32_1 = arith.constant 0 : i32
    return %c0_i32, %c0_i32_0 : i32, i32
  }
  func.func @transform_11(%arg0: i32) -> (i32, i32) {
    %c0_i32 = arith.constant 0 : i32
    %c0_i32_0 = arith.constant 0 : i32
    %c0_i32_1 = arith.constant 0 : i32
    return %c0_i32, %c0_i32_0 : i32, i32
  }
  func.func @transform_12(%arg0: i32) -> (i32, i32) {
    %c0_i32 = arith.constant 0 : i32
    %c0_i32_0 = arith.constant 0 : i32
    %c0_i32_1 = arith.constant 0 : i32
    return %c0_i32, %c0_i32_0 : i32, i32
  }
  func.func @transform_13(%arg0: i32) -> (i32, i32) {
    %c0_i32 = arith.constant 0 : i32
    %c0_i32_0 = arith.constant 0 : i32
    %c0_i32_1 = arith.constant 0 : i32
    return %c0_i32, %c0_i32_0 : i32, i32
  }
  func.func @transform_14(%arg0: i32) -> (i32, i32) {
    %c0_i32 = arith.constant 0 : i32
    %c0_i32_0 = arith.constant 0 : i32
    %c0_i32_1 = arith.constant 0 : i32
    return %c0_i32, %c0_i32_0 : i32, i32
  }
  func.func @transform_15(%arg0: i32) -> (i32, i32, i32) {
    %c0_i32 = arith.constant 0 : i32
    %c0_i32_0 = arith.constant 0 : i32
    %c0_i32_1 = arith.constant 0 : i32
    return %arg0, %c0_i32, %c0_i32_0 : i32, i32, i32
  }
}

</mosaic_0001>

<llo_original>
// kernel: tpu_custom_call.1
$region0: #{tpu_custom_call.1}
  #allocation0 [shape = 'u32[]', space=smem, size = 0x4, offset = 0x4, fixed_abs, tag = 'smem constant byte address 0x4 - core index']
  #allocation1 [shape = 'u32[144,128]{1,0:T(1,128)}', space=vmem, size = 0x12000, scoped, tag = 'internal scratch']
  %s0 = inlined_call_operand.vmem [shape: f32[2,8,32], index: 0, kind: input, shape index: {}]
  %s1 = inlined_call_operand.vmem [shape: f32[2,16,32], index: 1, kind: input, shape index: {}]
  %s2 = inlined_call_operand.hbm [shape: f32[2,8,8], index: 2, kind: input, shape index: {}]
  %s3 = inlined_call_operand.hbm [shape: f32[2,8,16], index: 3, kind: input, shape index: {}]
  %s4 = inlined_call_operand.hbm [shape: bf16[32,96], index: 4, kind: input, shape index: {}]
  %s5 = inlined_call_operand.hbm [shape: bf16[32,32], index: 5, kind: input, shape index: {}]
  %s6 = inlined_call_operand.hbm [shape: bf16[32,32], index: 6, kind: input, shape index: {}]
  %s7 = inlined_call_operand.hbm [shape: bf16[32,64], index: 7, kind: input, shape index: {}]
  %s8 = inlined_call_operand.hbm [shape: bf16[32,32], index: 8, kind: input, shape index: {}]
  %s9 = inlined_call_operand.hbm [shape: bf16[32,64], index: 9, kind: input, shape index: {}]
  %s10 = inlined_call_operand.vmem [shape: bf16[64,32], index: 10, kind: input, shape index: {}]
  %s11 = inlined_call_operand.vmem [shape: f32[1,128], index: 11, kind: input, shape index: {}]
  %s12 = inlined_call_operand.hbm [shape: f32[1,128], index: 12, kind: input, shape index: {}]
  %s13 = inlined_call_operand.hbm [shape: f32[1,96], index: 13, kind: input, shape index: {}]
  %s14 = inlined_call_operand.vmem [shape: f32[6,32], index: 14, kind: input, shape index: {}]
  %s15 = inlined_call_operand.hbm [shape: f32[2,8,32], index: 15, kind: output, shape index: {}]
  %s16 = sld [smem:[#allocation0]]
  $region133: #{tpu_custom_call.1} parent=0
    _
  %s18 = ssub.s32 1, %s16
  %s19 = scalar_select 0, %s18, %s16
  $region1: #{tpu_custom_call.1} parent=0
    #allocation2 [shape = 'u8[8192]{0}', space=vmem, size = 0x2000, scoped, tag = 'input window, operand 2']
    #allocation3 [shape = 's32[2]{0}', space=sflag, size = 0x8, scoped, tag = 'scoped memory for tpu_custom_call.1']
    #allocation4 [shape = 's32[2]{0}', space=sflag, size = 0x8, scoped, tag = 'scoped memory for tpu_custom_call.1']
    #allocation5 [shape = 'u8[8192]{0}', space=vmem, size = 0x2000, scoped, tag = 'input window, operand 3']
    #allocation6 [shape = 's32[2]{0}', space=sflag, size = 0x8, scoped, tag = 'scoped memory for tpu_custom_call.1']
    #allocation7 [shape = 'u8[8192]{0}', space=vmem, size = 0x2000, scoped, tag = 'input window, operand 4, single buffered']
    #allocation8 [shape = 'u8[8192]{0}', space=vmem, size = 0x2000, scoped, tag = 'input window, operand 5, single buffered']
    #allocation9 [shape = 's32[1]{0}', space=sflag, size = 0x4, scoped, tag = 'scoped memory for tpu_custom_call.1']
    #allocation10 [shape = 'u8[8192]{0}', space=vmem, size = 0x2000, scoped, tag = 'input window, operand 6, single buffered']
    #allocation11 [shape = 'u8[8192]{0}', space=vmem, size = 0x2000, scoped, tag = 'input window, operand 7, single buffered']
    #allocation12 [shape = 's32[1]{0}', space=sflag, size = 0x4, scoped, tag = 'scoped memory for tpu_custom_call.1']
    #allocation13 [shape = 'u8[8192]{0}', space=vmem, size = 0x2000, scoped, tag = 'input window, operand 8, single buffered']
    #allocation14 [shape = 'u8[8192]{0}', space=vmem, size = 0x2000, scoped, tag = 'input window, operand 9, single buffered']
    #allocation15 [shape = 's32[1]{0}', space=sflag, size = 0x4, scoped, tag = 'scoped memory for tpu_custom_call.1']
    #allocation16 [shape = 'u8[512]{0}', space=vmem, size = 0x400, scoped, tag = 'input window, operand 12, single buffered']
    #allocation17 [shape = 'u8[512]{0}', space=vmem, size = 0x400, scoped, tag = 'input window, operand 13, single buffered']
    #allocation18 [shape = 's32[1]{0}', space=sflag, size = 0x4, scoped, tag = 'scoped memory for tpu_custom_call.1']
    #allocation19 [shape = 'u8[8192]{0}', space=vmem, size = 0x2000, scoped, tag = 'output window, operand 0']
    %20 = vsyncpa [#allocation3], 0
    %s21 = scalar_lea.sflag [#allocation3], 1
    %22 = vsyncpa %s21, 0
    %23 = vsyncpa [#allocation6], 0
    %s24 = scalar_lea.sflag [#allocation6], 1
    %25 = vsyncpa %s24, 0
    %26 = vsyncpa [#allocation9], 0
    %27 = vsyncpa [#allocation12], 0
    %28 = vsyncpa [#allocation15], 0
    %29 = vsyncpa [#allocation18], 0
    %30 = vsyncpa [#allocation4], 0
    %s31 = scalar_lea.sflag [#allocation4], 1
    %32 = vsyncpa %s31, 0
    loop: start=0, step=1, limit=4
    $region2: #{tpu_custom_call.1} parent=1 // loop_pre_header
      _
    $region3: #{tpu_custom_call.1} parent=1 // loop_header
      %s34 = sphi 0, %s38
      %p35 = scmp.ge.s32.totalorder %s34, 4
      %s44 = sphi 0, %s46
      %s47 = sphi 0, %s44
      %s48 = sphi 0, %s47
      %s64 = sphi 0, %s48
      %s70 = sphi 0, %s72
      %s73 = sphi 0, %s70
      %s74 = sphi 0, %s73
      %s90 = sphi 0, %s74
      %s96 = sphi 0, %s98
      %s99 = sphi 0, %s96
      %s100 = sphi 0, %s99
      %s116 = sphi 0, %s100
      %s122 = sphi 0, %s124
      %s125 = sphi 0, %s122
      %s126 = sphi 0, %s125
      %s142 = sphi 0, %s126
      %s146 = sphi 0, %s146
      %s148 = sphi 0, %s146
      %s149 = sphi 0, %s148
      %s163 = sphi 0, %s149
      %s167 = sphi 0, %s167
      %s169 = sphi 0, %s167
      %s170 = sphi 0, %s169
      %s184 = sphi 0, %s170
      %s188 = sphi 0, %s188
      %s190 = sphi 0, %s188
      %s191 = sphi 0, %s190
      %s205 = sphi 0, %s191
      %s209 = sphi 0, %s209
      %s211 = sphi 0, %s209
      %s212 = sphi 0, %s211
      %s226 = sphi 0, %s212
      %s230 = sphi 0, %s230
      %s232 = sphi 0, %s230
      %s233 = sphi 0, %s232
      %s247 = sphi 0, %s233
      %s251 = sphi 0, %s251
      %s253 = sphi 0, %s251
      %s254 = sphi 0, %s253
      %s268 = sphi 0, %s254
      %s272 = sphi 0, %s272
      %s274 = sphi 0, %s272
      %s275 = sphi 0, %s274
      %s289 = sphi 0, %s275
      %s293 = sphi 0, %s293
      %s295 = sphi 0, %s293
      %s296 = sphi 0, %s295
      %s310 = sphi 0, %s296
      %s314 = sphi 0, %s314
      %s316 = sphi 0, %s314
      %s317 = sphi 0, %s316
      %s331 = sphi 0, %s317
      %s335 = sphi 0, %s335
      %s337 = sphi 0, %s335
      %s338 = sphi 0, %s337
      %s352 = sphi 0, %s338
      %s356 = sphi 0, %s356
      %s358 = sphi 0, %s356
      %s359 = sphi 0, %s358
      %s373 = sphi 0, %s359
      %s379 = sphi 0, %s381
      %s382 = sphi 0, %s379
      %s383 = sphi 0, %s382
      %s399 = sphi 0, %s383
    $region4: #{tpu_custom_call.1} parent=1 // loop_header_branch
      %37 = sbr.rel (%p35) target = $region8
    $region5: #{tpu_custom_call.1} parent=1 // loop_body
      %s39 = ssub.s32 %s34, 1
      %s40 = ssub.s32 %s34, 2
      %s41 = sadd.s32 %s34, 1
      %s42 = ssub.s32 %s34, %s41
      %p43 = scmp.eq.s32.totalorder %s42, 0
      %s45 = sadd.s32 %s44, 1
      %s46 = scalar_select %p43, %s44, %s45
      %p49 = pneg %p43
      %p50 = scmp.eq.s32.totalorder %s34, 1
      %p51 = por %p49, %p50
      %p52 = scmp.ne.s32.totalorder %s44, %s47
      %p53 = scmp.eq.s32.totalorder %s34, 0
      %p54 = por %p52, %p53
      %p55 = scmp.ne.s32.totalorder %s44, %s47
      %p56 = scmp.eq.s32.totalorder %s39, 1
      %p57 = por %p55, %p56
      %p58 = scmp.ne.s32.totalorder %s47, %s48
      %p59 = scmp.eq.s32.totalorder %s39, 0
      %p60 = por %p58, %p59
      %p61 = scmp.ne.s32.totalorder %s47, %s48
      %p62 = scmp.eq.s32.totalorder %s40, 1
      %p63 = por %p61, %p62
      %p65 = scmp.ne.s32.totalorder %s48, %s64
      %p66 = scmp.eq.s32.totalorder %s40, 0
      %p67 = por %p65, %p66
      %s68 = ssub.s32 %s34, %s41
      %p69 = scmp.eq.s32.totalorder %s68, 0
      %s71 = sadd.s32 %s70, 1
      %s72 = scalar_select %p69, %s70, %s71
      %p75 = pneg %p69
      %p76 = scmp.eq.s32.totalorder %s34, 1
      %p77 = por %p75, %p76
      %p78 = scmp.ne.s32.totalorder %s70, %s73
      %p79 = scmp.eq.s32.totalorder %s34, 0
      %p80 = por %p78, %p79
      %p81 = scmp.ne.s32.totalorder %s70, %s73
      %p82 = scmp.eq.s32.totalorder %s39, 1
      %p83 = por %p81, %p82
      %p84 = scmp.ne.s32.totalorder %s73, %s74
      %p85 = scmp.eq.s32.totalorder %s39, 0
      %p86 = por %p84, %p85
      %p87 = scmp.ne.s32.totalorder %s73, %s74
      %p88 = scmp.eq.s32.totalorder %s40, 1
      %p89 = por %p87, %p88
      %p91 = scmp.ne.s32.totalorder %s74, %s90
      %p92 = scmp.eq.s32.totalorder %s40, 0
      %p93 = por %p91, %p92
      %s94 = ssub.s32 %s34, %s41
      %p95 = scmp.eq.s32.totalorder %s94, 0
      %s97 = sadd.s32 %s96, 1
      %s98 = scalar_select %p95, %s96, %s97
      %p101 = pneg %p95
      %p102 = scmp.eq.s32.totalorder %s34, 1
      %p103 = por %p101, %p102
      %p104 = scmp.ne.s32.totalorder %s96, %s99
      %p105 = scmp.eq.s32.totalorder %s34, 0
      %p106 = por %p104, %p105
      %p107 = scmp.ne.s32.totalorder %s96, %s99
      %p108 = scmp.eq.s32.totalorder %s39, 1
      %p109 = por %p107, %p108
      %p110 = scmp.ne.s32.totalorder %s99, %s100
      %p111 = scmp.eq.s32.totalorder %s39, 0
      %p112 = por %p110, %p111
      %p113 = scmp.ne.s32.totalorder %s99, %s100
      %p114 = scmp.eq.s32.totalorder %s40, 1
      %p115 = por %p113, %p114
      %p117 = scmp.ne.s32.totalorder %s100, %s116
      %p118 = scmp.eq.s32.totalorder %s40, 0
      %p119 = por %p117, %p118
      %s120 = ssub.s32 %s34, %s41
      %p121 = scmp.eq.s32.totalorder %s120, 0
      %s123 = sadd.s32 %s122, 1
      %s124 = scalar_select %p121, %s122, %s123
      %p127 = pneg %p121
      %p128 = scmp.eq.s32.totalorder %s34, 1
      %p129 = por %p127, %p128
      %p130 = scmp.ne.s32.totalorder %s122, %s125
      %p131 = scmp.eq.s32.totalorder %s34, 0
      %p132 = por %p130, %p131
      %p133 = scmp.ne.s32.totalorder %s122, %s125
      %p134 = scmp.eq.s32.totalorder %s39, 1
      %p135 = por %p133, %p134
      %p136 = scmp.ne.s32.totalorder %s125, %s126
      %p137 = scmp.eq.s32.totalorder %s39, 0
      %p138 = por %p136, %p137
      %p139 = scmp.ne.s32.totalorder %s125, %s126
      %p140 = scmp.eq.s32.totalorder %s40, 1
      %p141 = por %p139, %p140
      %p143 = scmp.ne.s32.totalorder %s126, %s142
      %p144 = scmp.eq.s32.totalorder %s40, 0
      %p145 = por %p143, %p144
      %s147 = sadd.s32 %s146, 1
      %p150 = scmp.eq.s32.totalorder %s34, 1
      %p151 = scmp.ne.s32.totalorder %s146, %s148
      %p152 = scmp.eq.s32.totalorder %s34, 0
      %p153 = por %p151, %p152
      %p154 = scmp.ne.s32.totalorder %s146, %s148
      %p155 = scmp.eq.s32.totalorder %s39, 1
      %p156 = por %p154, %p155
      %p157 = scmp.ne.s32.totalorder %s148, %s149
      %p158 = scmp.eq.s32.totalorder %s39, 0
      %p159 = por %p157, %p158
      %p160 = scmp.ne.s32.totalorder %s148, %s149
      %p161 = scmp.eq.s32.totalorder %s40, 1
      %p162 = por %p160, %p161
      %p164 = scmp.ne.s32.totalorder %s149, %s163
      %p165 = scmp.eq.s32.totalorder %s40, 0
      %p166 = por %p164, %p165
      %s168 = sadd.s32 %s167, 1
      %p171 = scmp.eq.s32.totalorder %s34, 1
      %p172 = scmp.ne.s32.totalorder %s167, %s169
      %p173 = scmp.eq.s32.totalorder %s34, 0
      %p174 = por %p172, %p173
      %p175 = scmp.ne.s32.totalorder %s167, %s169
      %p176 = scmp.eq.s32.totalorder %s39, 1
      %p177 = por %p175, %p176
      %p178 = scmp.ne.s32.totalorder %s169, %s170
      %p179 = scmp.eq.s32.totalorder %s39, 0
      %p180 = por %p178, %p179
      %p181 = scmp.ne.s32.totalorder %s169, %s170
      %p182 = scmp.eq.s32.totalorder %s40, 1
      %p183 = por %p181, %p182
      %p185 = scmp.ne.s32.totalorder %s170, %s184
      %p186 = scmp.eq.s32.totalorder %s40, 0
      %p187 = por %p185, %p186
      %s189 = sadd.s32 %s188, 1
      %p192 = scmp.eq.s32.totalorder %s34, 1
      %p193 = scmp.ne.s32.totalorder %s188, %s190
      %p194 = scmp.eq.s32.totalorder %s34, 0
      %p195 = por %p193, %p194
      %p196 = scmp.ne.s32.totalorder %s188, %s190
      %p197 = scmp.eq.s32.totalorder %s39, 1
      %p198 = por %p196, %p197
      %p199 = scmp.ne.s32.totalorder %s190, %s191
      %p200 = scmp.eq.s32.totalorder %s39, 0
      %p201 = por %p199, %p200
      %p202 = scmp.ne.s32.totalorder %s190, %s191
      %p203 = scmp.eq.s32.totalorder %s40, 1
      %p204 = por %p202, %p203
      %p206 = scmp.ne.s32.totalorder %s191, %s205
      %p207 = scmp.eq.s32.totalorder %s40, 0
      %p208 = por %p206, %p207
      %s210 = sadd.s32 %s209, 1
      %p213 = scmp.eq.s32.totalorder %s34, 1
      %p214 = scmp.ne.s32.totalorder %s209, %s211
      %p215 = scmp.eq.s32.totalorder %s34, 0
      %p216 = por %p214, %p215
      %p217 = scmp.ne.s32.totalorder %s209, %s211
      %p218 = scmp.eq.s32.totalorder %s39, 1
      %p219 = por %p217, %p218
      %p220 = scmp.ne.s32.totalorder %s211, %s212
      %p221 = scmp.eq.s32.totalorder %s39, 0
      %p222 = por %p220, %p221
      %p223 = scmp.ne.s32.totalorder %s211, %s212
      %p224 = scmp.eq.s32.totalorder %s40, 1
      %p225 = por %p223, %p224
      %p227 = scmp.ne.s32.totalorder %s212, %s226
      %p228 = scmp.eq.s32.totalorder %s40, 0
      %p229 = por %p227, %p228
      %s231 = sadd.s32 %s230, 1
      %p234 = scmp.eq.s32.totalorder %s34, 1
      %p235 = scmp.ne.s32.totalorder %s230, %s232
      %p236 = scmp.eq.s32.totalorder %s34, 0
      %p237 = por %p235, %p236
      %p238 = scmp.ne.s32.totalorder %s230, %s232
      %p239 = scmp.eq.s32.totalorder %s39, 1
      %p240 = por %p238, %p239
      %p241 = scmp.ne.s32.totalorder %s232, %s233
      %p242 = scmp.eq.s32.totalorder %s39, 0
      %p243 = por %p241, %p242
      %p244 = scmp.ne.s32.totalorder %s232, %s233
      %p245 = scmp.eq.s32.totalorder %s40, 1
      %p246 = por %p244, %p245
      %p248 = scmp.ne.s32.totalorder %s233, %s247
      %p249 = scmp.eq.s32.totalorder %s40, 0
      %p250 = por %p248, %p249
      %s252 = sadd.s32 %s251, 1
      %p255 = scmp.eq.s32.totalorder %s34, 1
      %p256 = scmp.ne.s32.totalorder %s251, %s253
      %p257 = scmp.eq.s32.totalorder %s34, 0
      %p258 = por %p256, %p257
      %p259 = scmp.ne.s32.totalorder %s251, %s253
      %p260 = scmp.eq.s32.totalorder %s39, 1
      %p261 = por %p259, %p260
      %p262 = scmp.ne.s32.totalorder %s253, %s254
      %p263 = scmp.eq.s32.totalorder %s39, 0
      %p264 = por %p262, %p263
      %p265 = scmp.ne.s32.totalorder %s253, %s254
      %p266 = scmp.eq.s32.totalorder %s40, 1
      %p267 = por %p265, %p266
      %p269 = scmp.ne.s32.totalorder %s254, %s268
      %p270 = scmp.eq.s32.totalorder %s40, 0
      %p271 = por %p269, %p270
      %s273 = sadd.s32 %s272, 1
      %p276 = scmp.eq.s32.totalorder %s34, 1
      %p277 = scmp.ne.s32.totalorder %s272, %s274
      %p278 = scmp.eq.s32.totalorder %s34, 0
      %p279 = por %p277, %p278
      %p280 = scmp.ne.s32.totalorder %s272, %s274
      %p281 = scmp.eq.s32.totalorder %s39, 1
      %p282 = por %p280, %p281
      %p283 = scmp.ne.s32.totalorder %s274, %s275
      %p284 = scmp.eq.s32.totalorder %s39, 0
      %p285 = por %p283, %p284
      %p286 = scmp.ne.s32.totalorder %s274, %s275
      %p287 = scmp.eq.s32.totalorder %s40, 1
      %p288 = por %p286, %p287
      %p290 = scmp.ne.s32.totalorder %s275, %s289
      %p291 = scmp.eq.s32.totalorder %s40, 0
      %p292 = por %p290, %p291
      %s294 = sadd.s32 %s293, 1
      %p297 = scmp.eq.s32.totalorder %s34, 1
      %p298 = scmp.ne.s32.totalorder %s293, %s295
      %p299 = scmp.eq.s32.totalorder %s34, 0
      %p300 = por %p298, %p299
      %p301 = scmp.ne.s32.totalorder %s293, %s295
      %p302 = scmp.eq.s32.totalorder %s39, 1
      %p303 = por %p301, %p302
      %p304 = scmp.ne.s32.totalorder %s295, %s296
      %p305 = scmp.eq.s32.totalorder %s39, 0
      %p306 = por %p304, %p305
      %p307 = scmp.ne.s32.totalorder %s295, %s296
      %p308 = scmp.eq.s32.totalorder %s40, 1
      %p309 = por %p307, %p308
      %p311 = scmp.ne.s32.totalorder %s296, %s310
      %p312 = scmp.eq.s32.totalorder %s40, 0
      %p313 = por %p311, %p312
      %s315 = sadd.s32 %s314, 1
      %p318 = scmp.eq.s32.totalorder %s34, 1
      %p319 = scmp.ne.s32.totalorder %s314, %s316
      %p320 = scmp.eq.s32.totalorder %s34, 0
      %p321 = por %p319, %p320
      %p322 = scmp.ne.s32.totalorder %s314, %s316
      %p323 = scmp.eq.s32.totalorder %s39, 1
      %p324 = por %p322, %p323
      %p325 = scmp.ne.s32.totalorder %s316, %s317
      %p326 = scmp.eq.s32.totalorder %s39, 0
      %p327 = por %p325, %p326
      %p328 = scmp.ne.s32.totalorder %s316, %s317
      %p329 = scmp.eq.s32.totalorder %s40, 1
      %p330 = por %p328, %p329
      %p332 = scmp.ne.s32.totalorder %s317, %s331
      %p333 = scmp.eq.s32.totalorder %s40, 0
      %p334 = por %p332, %p333
      %s336 = sadd.s32 %s335, 1
      %p339 = scmp.eq.s32.totalorder %s34, 1
      %p340 = scmp.ne.s32.totalorder %s335, %s337
      %p341 = scmp.eq.s32.totalorder %s34, 0
      %p342 = por %p340, %p341
      %p343 = scmp.ne.s32.totalorder %s335, %s337
      %p344 = scmp.eq.s32.totalorder %s39, 1
      %p345 = por %p343, %p344
      %p346 = scmp.ne.s32.totalorder %s337, %s338
      %p347 = scmp.eq.s32.totalorder %s39, 0
      %p348 = por %p346, %p347
      %p349 = scmp.ne.s32.totalorder %s337, %s338
      %p350 = scmp.eq.s32.totalorder %s40, 1
      %p351 = por %p349, %p350
      %p353 = scmp.ne.s32.totalorder %s338, %s352
      %p354 = scmp.eq.s32.totalorder %s40, 0
      %p355 = por %p353, %p354
      %s357 = sadd.s32 %s356, 1
      %p360 = scmp.eq.s32.totalorder %s34, 1
      %p361 = scmp.ne.s32.totalorder %s356, %s358
      %p362 = scmp.eq.s32.totalorder %s34, 0
      %p363 = por %p361, %p362
      %p364 = scmp.ne.s32.totalorder %s356, %s358
      %p365 = scmp.eq.s32.totalorder %s39, 1
      %p366 = por %p364, %p365
      %p367 = scmp.ne.s32.totalorder %s358, %s359
      %p368 = scmp.eq.s32.totalorder %s39, 0
      %p369 = por %p367, %p368
      %p370 = scmp.ne.s32.totalorder %s358, %s359
      %p371 = scmp.eq.s32.totalorder %s40, 1
      %p372 = por %p370, %p371
      %p374 = scmp.ne.s32.totalorder %s359, %s373
      %p375 = scmp.eq.s32.totalorder %s40, 0
      %p376 = por %p374, %p375
      %s377 = ssub.s32 %s34, %s41
      %p378 = scmp.eq.s32.totalorder %s377, 0
      %s380 = sadd.s32 %s379, 1
      %s381 = scalar_select %p378, %s379, %s380
      %p384 = pneg %p378
      %p385 = scmp.eq.s32.totalorder %s34, 1
      %p386 = por %p384, %p385
      %p387 = scmp.ne.s32.totalorder %s379, %s382
      %p388 = scmp.eq.s32.totalorder %s34, 0
      %p389 = por %p387, %p388
      %p390 = scmp.ne.s32.totalorder %s379, %s382
      %p391 = scmp.eq.s32.totalorder %s39, 1
      %p392 = por %p390, %p391
      %p393 = scmp.ne.s32.totalorder %s382, %s383
      %p394 = scmp.eq.s32.totalorder %s39, 0
      %p395 = por %p393, %p394
      %p396 = scmp.ne.s32.totalorder %s382, %s383
      %p397 = scmp.eq.s32.totalorder %s40, 1
      %p398 = por %p396, %p397
      %p400 = scmp.ne.s32.totalorder %s383, %s399
      %p401 = scmp.eq.s32.totalorder %s40, 0
      %p402 = por %p400, %p401
      %p403 = scmp.le.s32.totalorder 1, %s34
      %p404 = scmp.lt.s32.totalorder %s34, 3
      %p405 = pnand %p403, %p404
      %p406 = pneg %p405
      // Predicated region
      $region9: #{tpu_custom_call.1} parent=5 // pred_check
        _
      $region10: #{tpu_custom_call.1} parent=5 // pred_check_branch
        %408 = sbr.rel (%p405) target = $region12
      $region11: #{tpu_custom_call.1} parent=5 // pred_region
        %s409 = ssub.s32 %s34, 1
        // Predicated region
        $region13: #{tpu_custom_call.1} parent=11 // pred_check
          %p410 = pneg %p159
        $region14: #{tpu_custom_call.1} parent=11 // pred_check_branch
          %412 = sbr.rel (%p410) target = $region16
        $region15: #{tpu_custom_call.1} parent=11 // pred_region
          %s414 = ssub.s32 256, 256
          %415 = vsyncadd [#allocation6], %s414
          %s416 = sshll.u32 [#allocation7], 4
          %s417 = int_to_ptr.vmem [resolvable:$true] %s416
          %422 = dma.hbm_to_vmem [thread:$0]  %s4, 256, %s417, [#allocation6], 64, 64, 4
        $region16: #{tpu_custom_call.1} parent=11 // pred_fallthru
          _
        // Predicated region
        $region17: #{tpu_custom_call.1} parent=11 // pred_check
          %p423 = pneg %p180
        $region18: #{tpu_custom_call.1} parent=11 // pred_check_branch
          %425 = sbr.rel (%p423) target = $region20
        $region19: #{tpu_custom_call.1} parent=11 // pred_region
          %s427 = ssub.s32 256, 256
          %428 = vsyncadd [#allocation9], %s427
          %s429 = sshll.u32 [#allocation8], 4
          %s430 = int_to_ptr.vmem [resolvable:$true] %s429
          %435 = dma.hbm_to_vmem [thread:$0]  %s5, 256, %s430, [#allocation9], 64, 64, 4
        $region20: #{tpu_custom_call.1} parent=11 // pred_fallthru
          _
        // Predicated region
        $region21: #{tpu_custom_call.1} parent=11 // pred_check
          %p436 = pneg %p201
        $region22: #{tpu_custom_call.1} parent=11 // pred_check_branch
          %438 = sbr.rel (%p436) target = $region24
        $region23: #{tpu_custom_call.1} parent=11 // pred_region
          %s440 = ssub.s32 256, 256
          %441 = vsyncadd [#allocation9], %s440
          %s442 = sshll.u32 [#allocation10], 4
          %s443 = int_to_ptr.vmem [resolvable:$true] %s442
          %448 = dma.hbm_to_vmem [thread:$0]  %s6, 256, %s443, [#allocation9], 64, 64, 4
        $region24: #{tpu_custom_call.1} parent=11 // pred_fallthru
          _
        // Predicated region
        $region25: #{tpu_custom_call.1} parent=11 // pred_check
          %p449 = pneg %p222
        $region26: #{tpu_custom_call.1} parent=11 // pred_check_branch
          %451 = sbr.rel (%p449) target = $region28
        $region27: #{tpu_custom_call.1} parent=11 // pred_region
          %s453 = ssub.s32 256, 256
          %454 = vsyncadd [#allocation12], %s453
          %s455 = sshll.u32 [#allocation11], 4
          %s456 = int_to_ptr.vmem [resolvable:$true] %s455
          %461 = dma.hbm_to_vmem [thread:$0]  %s7, 256, %s456, [#allocation12], 64, 64, 4
        $region28: #{tpu_custom_call.1} parent=11 // pred_fallthru
          _
        // Predicated region
        $region29: #{tpu_custom_call.1} parent=11 // pred_check
          %p462 = pneg %p243
        $region30: #{tpu_custom_call.1} parent=11 // pred_check_branch
          %464 = sbr.rel (%p462) target = $region32
        $region31: #{tpu_custom_call.1} parent=11 // pred_region
          %s466 = ssub.s32 256, 256
          %467 = vsyncadd [#allocation12], %s466
          %s468 = sshll.u32 [#allocation13], 4
          %s469 = int_to_ptr.vmem [resolvable:$true] %s468
          %474 = dma.hbm_to_vmem [thread:$0]  %s8, 256, %s469, [#allocation12], 64, 64, 4
        $region32: #{tpu_custom_call.1} parent=11 // pred_fallthru
          _
        // Predicated region
        $region33: #{tpu_custom_call.1} parent=11 // pred_check
          %p475 = pneg %p264
        $region34: #{tpu_custom_call.1} parent=11 // pred_check_branch
          %477 = sbr.rel (%p475) target = $region36
        $region35: #{tpu_custom_call.1} parent=11 // pred_region
          %s479 = ssub.s32 256, 256
          %480 = vsyncadd [#allocation15], %s479
          %s481 = sshll.u32 [#allocation14], 4
          %s482 = int_to_ptr.vmem [resolvable:$true] %s481
          %487 = dma.hbm_to_vmem [thread:$0]  %s9, 256, %s482, [#allocation15], 64, 64, 4
        $region36: #{tpu_custom_call.1} parent=11 // pred_fallthru
          _
        // Predicated region
        $region37: #{tpu_custom_call.1} parent=11 // pred_check
          %p488 = pneg %p285
        $region38: #{tpu_custom_call.1} parent=11 // pred_check_branch
          %490 = sbr.rel (%p488) target = $region40
        $region39: #{tpu_custom_call.1} parent=11 // pred_region
          _
        $region40: #{tpu_custom_call.1} parent=11 // pred_fallthru
          _
        // Predicated region
        $region41: #{tpu_custom_call.1} parent=11 // pred_check
          %p491 = pneg %p306
        $region42: #{tpu_custom_call.1} parent=11 // pred_check_branch
          %493 = sbr.rel (%p491) target = $region44
        $region43: #{tpu_custom_call.1} parent=11 // pred_region
          _
        $region44: #{tpu_custom_call.1} parent=11 // pred_fallthru
          _
        // Predicated region
        $region45: #{tpu_custom_call.1} parent=11 // pred_check
          %p494 = pneg %p327
        $region46: #{tpu_custom_call.1} parent=11 // pred_check_branch
          %496 = sbr.rel (%p494) target = $region48
        $region47: #{tpu_custom_call.1} parent=11 // pred_region
          %s498 = ssub.s32 16, 16
          %499 = vsyncadd [#allocation15], %s498
          %s501 = sshll.u32 [#allocation16], 4
          %s502 = int_to_ptr.vmem [resolvable:$true] %s501
          %504 = dma.hbm_to_vmem [thread:$0]  %s12, 16, %s502, [#allocation15]
        $region48: #{tpu_custom_call.1} parent=11 // pred_fallthru
          _
        // Predicated region
        $region49: #{tpu_custom_call.1} parent=11 // pred_check
          %p505 = pneg %p348
        $region50: #{tpu_custom_call.1} parent=11 // pred_check_branch
          %507 = sbr.rel (%p505) target = $region52
        $region51: #{tpu_custom_call.1} parent=11 // pred_region
          %s509 = ssub.s32 16, 16
          %510 = vsyncadd [#allocation18], %s509
          %s512 = sshll.u32 [#allocation17], 4
          %s513 = int_to_ptr.vmem [resolvable:$true] %s512
          %515 = dma.hbm_to_vmem [thread:$0]  %s13, 16, %s513, [#allocation18]
        $region52: #{tpu_custom_call.1} parent=11 // pred_fallthru
          _
        // Predicated region
        $region53: #{tpu_custom_call.1} parent=11 // pred_check
          %p516 = pneg %p369
        $region54: #{tpu_custom_call.1} parent=11 // pred_check_branch
          %518 = sbr.rel (%p516) target = $region56
        $region55: #{tpu_custom_call.1} parent=11 // pred_region
          _
        $region56: #{tpu_custom_call.1} parent=11 // pred_fallthru
          _
      $region12: #{tpu_custom_call.1} parent=5 // pred_fallthru
        _
      %p519 = scmp.lt.s32.totalorder %s34, 2
      // Predicated region
      $region57: #{tpu_custom_call.1} parent=5 // pred_check
        %p520 = pneg %p519
      $region58: #{tpu_custom_call.1} parent=5 // pred_check_branch
        %522 = sbr.rel (%p520) target = $region60
      $region59: #{tpu_custom_call.1} parent=5 // pred_region
        // Predicated region
        $region61: #{tpu_custom_call.1} parent=59 // pred_check
          %p523 = pneg %p54
        $region62: #{tpu_custom_call.1} parent=59 // pred_check_branch
          %525 = sbr.rel (%p523) target = $region64
        $region63: #{tpu_custom_call.1} parent=59 // pred_region
          %p526 = scmp.lt.s32.totalorder %s34, 1
          %s527 = scalar_select %p526, %s34, 1
          %s528 = smul.addr %s527, 8
          %s529 = scalar_lea.vmem %s0, %s528
        $region64: #{tpu_custom_call.1} parent=59 // pred_fallthru
          _
        // Predicated region
        $region65: #{tpu_custom_call.1} parent=59 // pred_check
          %p530 = pneg %p80
        $region66: #{tpu_custom_call.1} parent=59 // pred_check_branch
          %532 = sbr.rel (%p530) target = $region68
        $region67: #{tpu_custom_call.1} parent=59 // pred_region
          %p533 = scmp.lt.s32.totalorder %s34, 1
          %s534 = scalar_select %p533, %s34, 1
          %s535 = smul.addr %s534, 2
          %s536 = smul.addr %s535, 8
          %s537 = scalar_lea.vmem %s1, %s536
        $region68: #{tpu_custom_call.1} parent=59 // pred_fallthru
          _
        // Predicated region
        $region69: #{tpu_custom_call.1} parent=59 // pred_check
          %p538 = pneg %p106
        $region70: #{tpu_custom_call.1} parent=59 // pred_check_branch
          %540 = sbr.rel (%p538) target = $region72
        $region71: #{tpu_custom_call.1} parent=59 // pred_region
          %s541 = sand.u32 %s96, 1
          %s542 = scalar_lea.sflag [#allocation3], %s541
          %s543 = sand.u32 %s96, 1
          %s544 = smul.addr %s543, 8
          %s545 = scalar_lea.vmem [#allocation2], %s544
          %s547 = ssub.s32 128, 128
          %548 = vsyncadd %s542, %s547
          %s549 = smul.addr %s34, 128
          %s550 = scalar_lea.hbm %s2, %s549
          %s552 = sshll.u32 %s545, 4
          %s553 = int_to_ptr.vmem [resolvable:$true] %s552
          %555 = dma.hbm_to_vmem [thread:$0]  %s550, 128, %s553, %s542
        $region72: #{tpu_custom_call.1} parent=59 // pred_fallthru
          _
        // Predicated region
        $region73: #{tpu_custom_call.1} parent=59 // pred_check
          %p556 = pneg %p132
        $region74: #{tpu_custom_call.1} parent=59 // pred_check_branch
          %558 = sbr.rel (%p556) target = $region76
        $region75: #{tpu_custom_call.1} parent=59 // pred_region
          %s559 = sand.u32 %s34, 1
          %s560 = scalar_lea.sflag [#allocation6], %s559
          %s561 = sand.u32 %s122, 1
          %s562 = smul.addr %s561, 8
          %s563 = scalar_lea.vmem [#allocation5], %s562
          %s565 = ssub.s32 128, 128
          %566 = vsyncadd %s560, %s565
          %s567 = smul.addr %s34, 128
          %s568 = scalar_lea.hbm %s3, %s567
          %s570 = sshll.u32 %s563, 4
          %s571 = int_to_ptr.vmem [resolvable:$true] %s570
          %573 = dma.hbm_to_vmem [thread:$0]  %s568, 128, %s571, %s560
        $region76: #{tpu_custom_call.1} parent=59 // pred_fallthru
          _
      $region60: #{tpu_custom_call.1} parent=5 // pred_fallthru
        _
      %p574 = scmp.le.s32.totalorder 1, %s34
      %p575 = scmp.lt.s32.totalorder %s34, 3
      %p576 = pnand %p574, %p575
      %p577 = pneg %p576
      // Predicated region
      $region77: #{tpu_custom_call.1} parent=5 // pred_check
        _
      $region78: #{tpu_custom_call.1} parent=5 // pred_check_branch
        %579 = sbr.rel (%p576) target = $region80
      $region79: #{tpu_custom_call.1} parent=5 // pred_region
        %s580 = ssub.s32 %s34, 1
        %s581 = sand.u32 %s99, 1
        %s582 = scalar_lea.sflag [#allocation3], %s581
        %s583 = sand.u32 %s99, 1
        %s584 = smul.addr %s583, 8
        %s585 = scalar_lea.vmem [#allocation2], %s584
        // Predicated region
        $region81: #{tpu_custom_call.1} parent=79 // pred_check
          %p586 = pneg %p112
        $region82: #{tpu_custom_call.1} parent=79 // pred_check_branch
          %588 = sbr.rel (%p586) target = $region84
        $region83: #{tpu_custom_call.1} parent=79 // pred_region
          %589 = dma.done %s582, 128
        $region84: #{tpu_custom_call.1} parent=79 // pred_fallthru
          _
        %s590 = sand.u32 %s39, 1
        %s591 = scalar_lea.sflag [#allocation6], %s590
        %s592 = sand.u32 %s125, 1
        %s593 = smul.addr %s592, 8
        %s594 = scalar_lea.vmem [#allocation5], %s593
        // Predicated region
        $region85: #{tpu_custom_call.1} parent=79 // pred_check
          %p595 = pneg %p138
        $region86: #{tpu_custom_call.1} parent=79 // pred_check_branch
          %597 = sbr.rel (%p595) target = $region88
        $region87: #{tpu_custom_call.1} parent=79 // pred_region
          %598 = dma.done %s591, 128
        $region88: #{tpu_custom_call.1} parent=79 // pred_fallthru
          _
        // Predicated region
        $region89: #{tpu_custom_call.1} parent=79 // pred_check
          %p599 = pneg %p159
        $region90: #{tpu_custom_call.1} parent=79 // pred_check_branch
          %601 = sbr.rel (%p599) target = $region92
        $region91: #{tpu_custom_call.1} parent=79 // pred_region
          %602 = dma.done [#allocation6], 256
        $region92: #{tpu_custom_call.1} parent=79 // pred_fallthru
          _
        // Predicated region
        $region93: #{tpu_custom_call.1} parent=79 // pred_check
          %p603 = pneg %p180
        $region94: #{tpu_custom_call.1} parent=79 // pred_check_branch
          %605 = sbr.rel (%p603) target = $region96
        $region95: #{tpu_custom_call.1} parent=79 // pred_region
          %606 = dma.done [#allocation9], 256
        $region96: #{tpu_custom_call.1} parent=79 // pred_fallthru
          _
        // Predicated region
        $region97: #{tpu_custom_call.1} parent=79 // pred_check
          %p607 = pneg %p201
        $region98: #{tpu_custom_call.1} parent=79 // pred_check_branch
          %609 = sbr.rel (%p607) target = $region100
        $region99: #{tpu_custom_call.1} parent=79 // pred_region
          %610 = dma.done [#allocation9], 256
        $region100: #{tpu_custom_call.1} parent=79 // pred_fallthru
          _
        // Predicated region
        $region101: #{tpu_custom_call.1} parent=79 // pred_check
          %p611 = pneg %p222
        $region102: #{tpu_custom_call.1} parent=79 // pred_check_branch
          %613 = sbr.rel (%p611) target = $region104
        $region103: #{tpu_custom_call.1} parent=79 // pred_region
          %614 = dma.done [#allocation12], 256
        $region104: #{tpu_custom_call.1} parent=79 // pred_fallthru
          _
        // Predicated region
        $region105: #{tpu_custom_call.1} parent=79 // pred_check
          %p615 = pneg %p243
        $region106: #{tpu_custom_call.1} parent=79 // pred_check_branch
          %617 = sbr.rel (%p615) target = $region108
        $region107: #{tpu_custom_call.1} parent=79 // pred_region
          %618 = dma.done [#allocation12], 256
        $region108: #{tpu_custom_call.1} parent=79 // pred_fallthru
          _
        // Predicated region
        $region109: #{tpu_custom_call.1} parent=79 // pred_check
          %p619 = pneg %p264
        $region110: #{tpu_custom_call.1} parent=79 // pred_check_branch
          %621 = sbr.rel (%p619) target = $region112
        $region111: #{tpu_custom_call.1} parent=79 // pred_region
          %622 = dma.done [#allocation15], 256
        $region112: #{tpu_custom_call.1} parent=79 // pred_fallthru
          _
        // Predicated region
        $region113: #{tpu_custom_call.1} parent=79 // pred_check
          %p623 = pneg %p327
        $region114: #{tpu_custom_call.1} parent=79 // pred_check_branch
          %625 = sbr.rel (%p623) target = $region116
        $region115: #{tpu_custom_call.1} parent=79 // pred_region
          %626 = dma.done [#allocation15], 16
        $region116: #{tpu_custom_call.1} parent=79 // pred_fallthru
          _
        // Predicated region
        $region117: #{tpu_custom_call.1} parent=79 // pred_check
          %p627 = pneg %p348
        $region118: #{tpu_custom_call.1} parent=79 // pred_check_branch
          %629 = sbr.rel (%p627) target = $region120
        $region119: #{tpu_custom_call.1} parent=79 // pred_region
          %630 = dma.done [#allocation18], 16
        $region120: #{tpu_custom_call.1} parent=79 // pred_fallthru
          _
        %p631 = scmp.lt.s32.totalorder %s39, 1
        %s632 = scalar_select %p631, %s39, 1
        %s633 = smul.addr %s632, 8
        %s634 = scalar_lea.vmem %s0, %s633
        %p635 = pneg %p60
        %p636 = pneg %p57
        %p637 = scmp.lt.s32.totalorder %s39, 1
        %s638 = scalar_select %p637, %s39, 1
        %s639 = smul.addr %s638, 2
        %s640 = smul.addr %s639, 8
        %s641 = scalar_lea.vmem %s1, %s640
        %p642 = pneg %p86
        %p643 = pneg %p83
        %s644 = sand.u32 %s99, 1
        %s645 = scalar_lea.sflag [#allocation3], %s644
        %s646 = sand.u32 %s99, 1
        %s647 = smul.addr %s646, 8
        %s648 = scalar_lea.vmem [#allocation2], %s647
        %p649 = pneg %p112
        %p650 = pneg %p109
        %s651 = sand.u32 %s39, 1
        %s652 = scalar_lea.sflag [#allocation6], %s651
        %s653 = sand.u32 %s125, 1
        %s654 = smul.addr %s653, 8
        %s655 = scalar_lea.vmem [#allocation5], %s654
        %p656 = pneg %p138
        %p657 = pneg %p135
        %p658 = pneg %p159
        %p659 = pneg %p156
        %p660 = pneg %p180
        %p661 = pneg %p177
        %p662 = pneg %p201
        %p663 = pneg %p198
        %p664 = pneg %p222
        %p665 = pneg %p219
        %p666 = pneg %p243
        %p667 = pneg %p240
        %p668 = pneg %p264
        %p669 = pneg %p261
        %p670 = pneg %p285
        %p671 = pneg %p282
        %p672 = pneg %p306
        %p673 = pneg %p303
        %p674 = pneg %p327
        %p675 = pneg %p324
        %p676 = pneg %p348
        %p677 = pneg %p345
        %p678 = pneg %p369
        %p679 = pneg %p366
        %p680 = pneg %p395
        %p681 = pneg %p392
        %s682 = sand.u32 %s382, 1
        %s683 = scalar_lea.sflag [#allocation4], %s682
        %s684 = sand.u32 %s382, 1
        %s685 = smul.addr %s684, 8
        %s686 = scalar_lea.vmem [#allocation19], %s685
        %p687 = scmp.lt.s32.totalorder %s39, 1
        %s688 = scalar_select %p687, %s39, 1
        %s689 = smul.addr %s688, 8
        %s690 = scalar_lea.vmem %s0, %s689
        %p691 = scmp.lt.s32.totalorder %s39, 1
        %s692 = scalar_select %p691, %s39, 1
        %s693 = smul.addr %s692, 2
        %s694 = smul.addr %s693, 8
        %s695 = scalar_lea.vmem %s1, %s694
        %v697 = vld [vmem:[%s690] sm:$0xff]
        %v698 = vld [vmem:[%s695] sm:$0xff]
        %v699 = vld [vmem:[%s695 + $0x8] sm:$0xff]
        %v700 = vld [vmem:[%s585] sm:$0xff]
        %v701 = vld [vmem:[%s594] sm:$0xff]
        %v702 = vld [vmem:[%s11] sm:$0x1]
        %v703 = vld [vmem:[#allocation16] sm:$0x1]
        %v704 = vld [vmem:[#allocation17] sm:$0x1]
        %v705 = vld [vmem:[%s14] sm:$0x3f]
        %v706 = vpack.c.bf16 %v697, %v697
        %v707 = vld [vmem:[#allocation7] sm:$0xf]
        %v708 = vld [vmem:[#allocation7 + $0x4] sm:$0xf]
        %v709 = vld [vmem:[#allocation7 + $0x8] sm:$0xf]
        %v710 = vld [vmem:[#allocation7 + $0xc] sm:$0xf]
        %v712 = vlaneseq
        %v713 = vshrl.u32 %v712, 7
        %v714 = vsub.s32 0, %v713
        %v715 = vrot.slane %v702, %v714
        %v721 = vunpack.c.l.b16 %v707
        %v722 = vunpack.c.l.b16 %v708
        %v723 = vunpack.c.l.b16 %v709
        %v724 = vunpack.c.l.b16 %v710
        %v725 = vpack.c.b16 %v722, %v721
        %v726 = vpack.c.b16 %v724, %v723
        %vm729 = vcmask 261120
        %v731 = vsel %vm729, %v706, 0
        %733 = vmatprep.subr.bf16.mxu0 0
        %734 = vmatpush1.bf16.msra.mxu0 0
        %735 = vmatprep.subr.bf16.mxu0 0
        %736 = vmatpush1.bf16.msra.mxu0 0
        %737 = vmatprep.subr.bf16.mxu0 0
        %738 = vmatpush1.bf16.msra.mxu0 0
        %739 = vmatprep.subr.bf16.mxu0 0
        %740 = vmatpush1.bf16.msra.mxu0 0
        %741 = vmatprep.subr.bf16.mxu0 0
        %742 = vmatpush1.bf16.msra.mxu0 0
        %743 = vmatprep.subr.bf16.mxu0 0
        %744 = vmatpush1.bf16.msra.mxu0 0
        %745 = vmatprep.subr.bf16.mxu0 0
        %746 = vmatpush1.bf16.msra.mxu0 %v726
        %747 = vmatprep.subr.bf16.mxu0 0
        %748 = vmatpush1.bf16.msra.mxu0 %v725
        %749 = vmatprep.subr.bf16.mxu0 0
        %750 = vmatpush2.bf16.msra.mxu0 0
        %751 = vmatprep.subr.bf16.mxu0 0
        %752 = vmatpush2.bf16.msra.mxu0 0
        %753 = vmatprep.subr.bf16.mxu0 0
        %754 = vmatpush2.bf16.msra.mxu0 0
        %755 = vmatprep.subr.bf16.mxu0 0
        %756 = vmatpush2.bf16.msra.mxu0 0
        %757 = vmatprep.subr.bf16.mxu0 0
        %758 = vmatpush2.bf16.msra.mxu0 0
        %759 = vmatprep.subr.bf16.mxu0 0
        %760 = vmatpush2.bf16.msra.mxu0 0
        %761 = vmatprep.subr.bf16.mxu0 0
        %762 = vmatpush2.bf16.msra.mxu0 0
        %763 = vmatprep.subr.bf16.mxu0 0
        %764 = vmatpush2.bf16.msra.mxu0 0
        %765 = vmatprep.mubr.bf16.mxu0 0
        %766 = vmatmul.mubr.bf16.gmra.mxu0 %v731
        %v767 = vpop.f32.mrf.mxu0
        %v768 = vadd.f32 %v715, %v767
        %v769 = vpop.f32.mrf.mxu0
        %v770 = vpop.f32.mrf.mxu0
        %v771 = vpop.f32.mrf.mxu0
        %772 = vdwg.mxu0
        %v773 = vpack.c.bf16 %v768, %v768
        %775 = vrot.lane.b32.xlu0 %v773, 96
        %v776 = vpop.permute.xlu0 %775
        %vm777 = vcmask 64512
        %v779 = vsel %vm777, %v773, 0
        %v782 = vsel %vm777, %v776, 0
        %784 = vmatprep.subr.bf16.mxu0 0
        %785 = vmatpush1.bf16.xpose.msra.mxu0 0
        %786 = vmatprep.subr.bf16.mxu0 0
        %787 = vmatpush1.bf16.xpose.msra.mxu0 0
        %788 = vmatprep.subr.bf16.mxu0 0
        %789 = vmatpush1.bf16.xpose.msra.mxu0 0
        %790 = vmatprep.subr.bf16.mxu0 0
        %791 = vmatpush1.bf16.xpose.msra.mxu0 0
        %792 = vmatprep.subr.bf16.mxu0 0
        %793 = vmatpush1.bf16.xpose.msra.mxu0 0
        %794 = vmatprep.subr.bf16.mxu0 0
        %795 = vmatpush1.bf16.xpose.msra.mxu0 0
        %796 = vmatprep.subr.bf16.mxu0 0
        %797 = vmatpush1.bf16.xpose.msra.mxu0 0
        %798 = vmatprep.subr.bf16.mxu0 0
        %799 = vmatpush1.bf16.xpose.msra.mxu0 %v782
        %800 = vmatprep.subr.bf16.mxu0 0
        %801 = vmatpush2.bf16.xpose.msra.mxu0 0
        %802 = vmatprep.subr.bf16.mxu0 0
        %803 = vmatpush2.bf16.xpose.msra.mxu0 0
        %804 = vmatprep.subr.bf16.mxu0 0
        %805 = vmatpush2.bf16.xpose.msra.mxu0 0
        %806 = vmatprep.subr.bf16.mxu0 0
        %807 = vmatpush2.bf16.xpose.msra.mxu0 0
        %808 = vmatprep.subr.bf16.mxu0 0
        %809 = vmatpush2.bf16.xpose.msra.mxu0 0
        %810 = vmatprep.subr.bf16.mxu0 0
        %811 = vmatpush2.bf16.xpose.msra.mxu0 0
        %812 = vmatprep.subr.bf16.mxu0 0
        %813 = vmatpush2.bf16.xpose.msra.mxu0 0
        %814 = vmatprep.subr.bf16.mxu0 0
        %815 = vmatpush2.bf16.xpose.msra.mxu0 0
        %816 = vmatprep.mubr.bf16.mxu0 0
        %817 = vmatmul.mubr.bf16.gmra.mxu0 %v779
        %v818 = vpop.f32.mrf.mxu0
        %v819 = vadd.f32 %v700, %v818
        %v820 = vpop.f32.mrf.mxu0
        %v821 = vpop.f32.mrf.mxu0
        %v822 = vpop.f32.mrf.mxu0
        %823 = vdwg.mxu0
        %v824 = vsel %vm777, %v819, -inf
        %825 = vmax.xlane.f32.xlu0 %v824
        %v826 = vpop.xlane.xlu0 %825
        %v827 = vsub.f32 %v819, %v826
        %v828 = vmul.f32 %v827, 1.442695
        %v829 = vpow.pop %v828
        %v830 = vsel %vm777, %v829, 0.0
        %831 = vadd.xlane.f32.xlu0 %v830
        %v832 = vpop.xlane.xlu0 %831
        %v833 = vrcp.pop %v832
        %v834 = vmul.f32 %v829, %v833
        %v835 = vpack.c.bf16 %v834, %v834
        %836 = vrot.lane.b32.xlu0 %v773, 64
        %v837 = vpop.permute.xlu0 %836
        %v839 = vsel %vm777, %v835, 0
        %vm841 = vcmask 1043456
        %v843 = vsel %vm841, %v837, 0
        %845 = vmatprep.subr.bf16.mxu0 0
        %846 = vmatpush1.bf16.msra.mxu0 0
        %847 = vmatprep.subr.bf16.mxu0 0
        %848 = vmatpush1.bf16.msra.mxu0 0
        %849 = vmatprep.subr.bf16.mxu0 0
        %850 = vmatpush1.bf16.msra.mxu0 0
        %851 = vmatprep.subr.bf16.mxu0 0
        %852 = vmatpush1.bf16.msra.mxu0 0
        %853 = vmatprep.subr.bf16.mxu0 0
        %854 = vmatpush1.bf16.msra.mxu0 0
        %855 = vmatprep.subr.bf16.mxu0 0
        %856 = vmatpush1.bf16.msra.mxu0 0
        %857 = vmatprep.subr.bf16.mxu0 0
        %858 = vmatpush1.bf16.msra.mxu0 0
        %859 = vmatprep.subr.bf16.mxu0 0
        %860 = vmatpush1.bf16.msra.mxu0 %v843
        %861 = vmatprep.subr.bf16.mxu0 0
        %862 = vmatpush2.bf16.msra.mxu0 0
        %863 = vmatprep.subr.bf16.mxu0 0
        %864 = vmatpush2.bf16.msra.mxu0 0
        %865 = vmatprep.subr.bf16.mxu0 0
        %866 = vmatpush2.bf16.msra.mxu0 0
        %867 = vmatprep.subr.bf16.mxu0 0
        %868 = vmatpush2.bf16.msra.mxu0 0
        %869 = vmatprep.subr.bf16.mxu0 0
        %870 = vmatpush2.bf16.msra.mxu0 0
        %871 = vmatprep.subr.bf16.mxu0 0
        %872 = vmatpush2.bf16.msra.mxu0 0
        %873 = vmatprep.subr.bf16.mxu0 0
        %874 = vmatpush2.bf16.msra.mxu0 0
        %875 = vmatprep.subr.bf16.mxu0 0
        %876 = vmatpush2.bf16.msra.mxu0 0
        %877 = vmatprep.mubr.bf16.mxu0 0
        %878 = vmatmul.mubr.bf16.gmra.mxu0 %v839
        %v879 = vpop.f32.mrf.mxu0
        %v880 = vadd.f32 0.0, %v879
        %v881 = vpop.f32.mrf.mxu0
        %v882 = vpop.f32.mrf.mxu0
        %v883 = vpop.f32.mrf.mxu0
        %884 = vdwg.mxu0
        %885 = vrot.lane.b32.xlu0 %v773, 120
        %v886 = vpop.permute.xlu0 %885
        %887 = vrot.lane.b32.xlu0 %v773, 88
        %v888 = vpop.permute.xlu0 %887
        %v890 = vsel %vm777, %v886, 0
        %v893 = vsel %vm777, %v888, 0
        %895 = vmatprep.subr.bf16.mxu0 0
        %896 = vmatpush1.bf16.xpose.msra.mxu0 0
        %897 = vmatprep.subr.bf16.mxu0 0
        %898 = vmatpush1.bf16.xpose.msra.mxu0 0
        %899 = vmatprep.subr.bf16.mxu0 0
        %900 = vmatpush1.bf16.xpose.msra.mxu0 0
        %901 = vmatprep.subr.bf16.mxu0 0
        %902 = vmatpush1.bf16.xpose.msra.mxu0 0
        %903 = vmatprep.subr.bf16.mxu0 0
        %904 = vmatpush1.bf16.xpose.msra.mxu0 0
        %905 = vmatprep.subr.bf16.mxu0 0
        %906 = vmatpush1.bf16.xpose.msra.mxu0 0
        %907 = vmatprep.subr.bf16.mxu0 0
        %908 = vmatpush1.bf16.xpose.msra.mxu0 0
        %909 = vmatprep.subr.bf16.mxu0 0
        %910 = vmatpush1.bf16.xpose.msra.mxu0 %v893
        %911 = vmatprep.subr.bf16.mxu0 0
        %912 = vmatpush2.bf16.xpose.msra.mxu0 0
        %913 = vmatprep.subr.bf16.mxu0 0
        %914 = vmatpush2.bf16.xpose.msra.mxu0 0
        %915 = vmatprep.subr.bf16.mxu0 0
        %916 = vmatpush2.bf16.xpose.msra.mxu0 0
        %917 = vmatprep.subr.bf16.mxu0 0
        %918 = vmatpush2.bf16.xpose.msra.mxu0 0
        %919 = vmatprep.subr.bf16.mxu0 0
        %920 = vmatpush2.bf16.xpose.msra.mxu0 0
        %921 = vmatprep.subr.bf16.mxu0 0
        %922 = vmatpush2.bf16.xpose.msra.mxu0 0
        %923 = vmatprep.subr.bf16.mxu0 0
        %924 = vmatpush2.bf16.xpose.msra.mxu0 0
        %925 = vmatprep.subr.bf16.mxu0 0
        %926 = vmatpush2.bf16.xpose.msra.mxu0 0
        %927 = vmatprep.mubr.bf16.mxu0 0
        %928 = vmatmul.mubr.bf16.gmra.mxu0 %v890
        %v929 = vpop.f32.mrf.mxu0
        %v930 = vadd.f32 %v700, %v929
        %v931 = vpop.f32.mrf.mxu0
        %v932 = vpop.f32.mrf.mxu0
        %v933 = vpop.f32.mrf.mxu0
        %934 = vdwg.mxu0
        %v935 = vsel %vm777, %v930, -inf
        %936 = vmax.xlane.f32.xlu0 %v935
        %v937 = vpop.xlane.xlu0 %936
        %v938 = vsub.f32 %v930, %v937
        %v939 = vmul.f32 %v938, 1.442695
        %v940 = vpow.pop %v939
        %v941 = vsel %vm777, %v940, 0.0
        %942 = vadd.xlane.f32.xlu0 %v941
        %v943 = vpop.xlane.xlu0 %942
        %v944 = vrcp.pop %v943
        %v945 = vmul.f32 %v940, %v944
        %v946 = vpack.c.bf16 %v945, %v945
        %947 = vrot.lane.b32.xlu0 %v773, 56
        %v948 = vpop.permute.xlu0 %947
        %v950 = vsel %vm777, %v946, 0
        %v953 = vsel %vm841, %v948, 0
        %955 = vmatprep.subr.bf16.mxu0 0
        %956 = vmatpush1.bf16.msra.mxu0 0
        %957 = vmatprep.subr.bf16.mxu0 0
        %958 = vmatpush1.bf16.msra.mxu0 0
        %959 = vmatprep.subr.bf16.mxu0 0
        %960 = vmatpush1.bf16.msra.mxu0 0
        %961 = vmatprep.subr.bf16.mxu0 0
        %962 = vmatpush1.bf16.msra.mxu0 0
        %963 = vmatprep.subr.bf16.mxu0 0
        %964 = vmatpush1.bf16.msra.mxu0 0
        %965 = vmatprep.subr.bf16.mxu0 0
        %966 = vmatpush1.bf16.msra.mxu0 0
        %967 = vmatprep.subr.bf16.mxu0 0
        %968 = vmatpush1.bf16.msra.mxu0 0
        %969 = vmatprep.subr.bf16.mxu0 0
        %970 = vmatpush1.bf16.msra.mxu0 %v953
        %971 = vmatprep.subr.bf16.mxu0 0
        %972 = vmatpush2.bf16.msra.mxu0 0
        %973 = vmatprep.subr.bf16.mxu0 0
        %974 = vmatpush2.bf16.msra.mxu0 0
        %975 = vmatprep.subr.bf16.mxu0 0
        %976 = vmatpush2.bf16.msra.mxu0 0
        %977 = vmatprep.subr.bf16.mxu0 0
        %978 = vmatpush2.bf16.msra.mxu0 0
        %979 = vmatprep.subr.bf16.mxu0 0
        %980 = vmatpush2.bf16.msra.mxu0 0
        %981 = vmatprep.subr.bf16.mxu0 0
        %982 = vmatpush2.bf16.msra.mxu0 0
        %983 = vmatprep.subr.bf16.mxu0 0
        %984 = vmatpush2.bf16.msra.mxu0 0
        %985 = vmatprep.subr.bf16.mxu0 0
        %986 = vmatpush2.bf16.msra.mxu0 0
        %987 = vmatprep.mubr.bf16.mxu0 0
        %988 = vmatmul.mubr.bf16.gmra.mxu0 %v950
        %v989 = vpop.f32.mrf.mxu0
        %v990 = vadd.f32 0.0, %v989
        %v991 = vpop.f32.mrf.mxu0
        %v992 = vpop.f32.mrf.mxu0
        %v993 = vpop.f32.mrf.mxu0
        %994 = vdwg.mxu0
        %995 = vrot.lane.b32.xlu0 %v773, 112
        %v996 = vpop.permute.xlu0 %995
        %997 = vrot.lane.b32.xlu0 %v773, 80
        %v998 = vpop.permute.xlu0 %997
        %v1000 = vsel %vm777, %v996, 0
        %v1003 = vsel %vm777, %v998, 0
        %1005 = vmatprep.subr.bf16.mxu0 0
        %1006 = vmatpush1.bf16.xpose.msra.mxu0 0
        %1007 = vmatprep.subr.bf16.mxu0 0
        %1008 = vmatpush1.bf16.xpose.msra.mxu0 0
        %1009 = vmatprep.subr.bf16.mxu0 0
        %1010 = vmatpush1.bf16.xpose.msra.mxu0 0
        %1011 = vmatprep.subr.bf16.mxu0 0
        %1012 = vmatpush1.bf16.xpose.msra.mxu0 0
        %1013 = vmatprep.subr.bf16.mxu0 0
        %1014 = vmatpush1.bf16.xpose.msra.mxu0 0
        %1015 = vmatprep.subr.bf16.mxu0 0
        %1016 = vmatpush1.bf16.xpose.msra.mxu0 0
        %1017 = vmatprep.subr.bf16.mxu0 0
        %1018 = vmatpush1.bf16.xpose.msra.mxu0 0
        %1019 = vmatprep.subr.bf16.mxu0 0
        %1020 = vmatpush1.bf16.xpose.msra.mxu0 %v1003
        %1021 = vmatprep.subr.bf16.mxu0 0
        %1022 = vmatpush2.bf16.xpose.msra.mxu0 0
        %1023 = vmatprep.subr.bf16.mxu0 0
        %1024 = vmatpush2.bf16.xpose.msra.mxu0 0
        %1025 = vmatprep.subr.bf16.mxu0 0
        %1026 = vmatpush2.bf16.xpose.msra.mxu0 0
        %1027 = vmatprep.subr.bf16.mxu0 0
        %1028 = vmatpush2.bf16.xpose.msra.mxu0 0
        %1029 = vmatprep.subr.bf16.mxu0 0
        %1030 = vmatpush2.bf16.xpose.msra.mxu0 0
        %1031 = vmatprep.subr.bf16.mxu0 0
        %1032 = vmatpush2.bf16.xpose.msra.mxu0 0
        %1033 = vmatprep.subr.bf16.mxu0 0
        %1034 = vmatpush2.bf16.xpose.msra.mxu0 0
        %1035 = vmatprep.subr.bf16.mxu0 0
        %1036 = vmatpush2.bf16.xpose.msra.mxu0 0
        %1037 = vmatprep.mubr.bf16.mxu0 0
        %1038 = vmatmul.mubr.bf16.gmra.mxu0 %v1000
        %v1039 = vpop.f32.mrf.mxu0
        %v1040 = vadd.f32 %v700, %v1039
        %v1041 = vpop.f32.mrf.mxu0
        %v1042 = vpop.f32.mrf.mxu0
        %v1043 = vpop.f32.mrf.mxu0
        %1044 = vdwg.mxu0
        %v1045 = vsel %vm777, %v1040, -inf
        %1046 = vmax.xlane.f32.xlu0 %v1045
        %v1047 = vpop.xlane.xlu0 %1046
        %v1048 = vsub.f32 %v1040, %v1047
        %v1049 = vmul.f32 %v1048, 1.442695
        %v1050 = vpow.pop %v1049
        %v1051 = vsel %vm777, %v1050, 0.0
        %1052 = vadd.xlane.f32.xlu0 %v1051
        %v1053 = vpop.xlane.xlu0 %1052
        %v1054 = vrcp.pop %v1053
        %v1055 = vmul.f32 %v1050, %v1054
        %v1056 = vpack.c.bf16 %v1055, %v1055
        %1057 = vrot.lane.b32.xlu0 %v773, 48
        %v1058 = vpop.permute.xlu0 %1057
        %v1060 = vsel %vm777, %v1056, 0
        %v1063 = vsel %vm841, %v1058, 0
        %1065 = vmatprep.subr.bf16.mxu0 0
        %1066 = vmatpush1.bf16.msra.mxu0 0
        %1067 = vmatprep.subr.bf16.mxu0 0
        %1068 = vmatpush1.bf16.msra.mxu0 0
        %1069 = vmatprep.subr.bf16.mxu0 0
        %1070 = vmatpush1.bf16.msra.mxu0 0
        %1071 = vmatprep.subr.bf16.mxu0 0
        %1072 = vmatpush1.bf16.msra.mxu0 0
        %1073 = vmatprep.subr.bf16.mxu0 0
        %1074 = vmatpush1.bf16.msra.mxu0 0
        %1075 = vmatprep.subr.bf16.mxu0 0
        %1076 = vmatpush1.bf16.msra.mxu0 0
        %1077 = vmatprep.subr.bf16.mxu0 0
        %1078 = vmatpush1.bf16.msra.mxu0 0
        %1079 = vmatprep.subr.bf16.mxu0 0
        %1080 = vmatpush1.bf16.msra.mxu0 %v1063
        %1081 = vmatprep.subr.bf16.mxu0 0
        %1082 = vmatpush2.bf16.msra.mxu0 0
        %1083 = vmatprep.subr.bf16.mxu0 0
        %1084 = vmatpush2.bf16.msra.mxu0 0
        %1085 = vmatprep.subr.bf16.mxu0 0
        %1086 = vmatpush2.bf16.msra.mxu0 0
        %1087 = vmatprep.subr.bf16.mxu0 0
        %1088 = vmatpush2.bf16.msra.mxu0 0
        %1089 = vmatprep.subr.bf16.mxu0 0
        %1090 = vmatpush2.bf16.msra.mxu0 0
        %1091 = vmatprep.subr.bf16.mxu0 0
        %1092 = vmatpush2.bf16.msra.mxu0 0
        %1093 = vmatprep.subr.bf16.mxu0 0
        %1094 = vmatpush2.bf16.msra.mxu0 0
        %1095 = vmatprep.subr.bf16.mxu0 0
        %1096 = vmatpush2.bf16.msra.mxu0 0
        %1097 = vmatprep.mubr.bf16.mxu0 0
        %1098 = vmatmul.mubr.bf16.gmra.mxu0 %v1060
        %v1099 = vpop.f32.mrf.mxu0
        %v1100 = vadd.f32 0.0, %v1099
        %v1101 = vpop.f32.mrf.mxu0
        %v1102 = vpop.f32.mrf.mxu0
        %v1103 = vpop.f32.mrf.mxu0
        %1104 = vdwg.mxu0
        %1105 = vrot.lane.b32.xlu0 %v773, 104
        %v1106 = vpop.permute.xlu0 %1105
        %1107 = vrot.lane.b32.xlu0 %v773, 72
        %v1108 = vpop.permute.xlu0 %1107
        %v1110 = vsel %vm777, %v1106, 0
        %v1113 = vsel %vm777, %v1108, 0
        %1115 = vmatprep.subr.bf16.mxu0 0
        %1116 = vmatpush1.bf16.xpose.msra.mxu0 0
        %1117 = vmatprep.subr.bf16.mxu0 0
        %1118 = vmatpush1.bf16.xpose.msra.mxu0 0
        %1119 = vmatprep.subr.bf16.mxu0 0
        %1120 = vmatpush1.bf16.xpose.msra.mxu0 0
        %1121 = vmatprep.subr.bf16.mxu0 0
        %1122 = vmatpush1.bf16.xpose.msra.mxu0 0
        %1123 = vmatprep.subr.bf16.mxu0 0
        %1124 = vmatpush1.bf16.xpose.msra.mxu0 0
        %1125 = vmatprep.subr.bf16.mxu0 0
        %1126 = vmatpush1.bf16.xpose.msra.mxu0 0
        %1127 = vmatprep.subr.bf16.mxu0 0
        %1128 = vmatpush1.bf16.xpose.msra.mxu0 0
        %1129 = vmatprep.subr.bf16.mxu0 0
        %1130 = vmatpush1.bf16.xpose.msra.mxu0 %v1113
        %1131 = vmatprep.subr.bf16.mxu0 0
        %1132 = vmatpush2.bf16.xpose.msra.mxu0 0
        %1133 = vmatprep.subr.bf16.mxu0 0
        %1134 = vmatpush2.bf16.xpose.msra.mxu0 0
        %1135 = vmatprep.subr.bf16.mxu0 0
        %1136 = vmatpush2.bf16.xpose.msra.mxu0 0
        %1137 = vmatprep.subr.bf16.mxu0 0
        %1138 = vmatpush2.bf16.xpose.msra.mxu0 0
        %1139 = vmatprep.subr.bf16.mxu0 0
        %1140 = vmatpush2.bf16.xpose.msra.mxu0 0
        %1141 = vmatprep.subr.bf16.mxu0 0
        %1142 = vmatpush2.bf16.xpose.msra.mxu0 0
        %1143 = vmatprep.subr.bf16.mxu0 0
        %1144 = vmatpush2.bf16.xpose.msra.mxu0 0
        %1145 = vmatprep.subr.bf16.mxu0 0
        %1146 = vmatpush2.bf16.xpose.msra.mxu0 0
        %1147 = vmatprep.mubr.bf16.mxu0 0
        %1148 = vmatmul.mubr.bf16.gmra.mxu0 %v1110
        %v1149 = vpop.f32.mrf.mxu0
        %v1150 = vadd.f32 %v700, %v1149
        %v1151 = vpop.f32.mrf.mxu0
        %v1152 = vpop.f32.mrf.mxu0
        %v1153 = vpop.f32.mrf.mxu0
        %1154 = vdwg.mxu0
        %v1155 = vsel %vm777, %v1150, -inf
        %1156 = vmax.xlane.f32.xlu0 %v1155
        %v1157 = vpop.xlane.xlu0 %1156
        %v1158 = vsub.f32 %v1150, %v1157
        %v1159 = vmul.f32 %v1158, 1.442695
        %v1160 = vpow.pop %v1159
        %v1161 = vsel %vm777, %v1160, 0.0
        %1162 = vadd.xlane.f32.xlu0 %v1161
        %v1163 = vpop.xlane.xlu0 %1162
        %v1164 = vrcp.pop %v1163
        %v1165 = vmul.f32 %v1160, %v1164
        %v1166 = vpack.c.bf16 %v1165, %v1165
        %1167 = vrot.lane.b32.xlu0 %v773, 40
        %v1168 = vpop.permute.xlu0 %1167
        %v1170 = vsel %vm777, %v1166, 0
        %v1173 = vsel %vm841, %v1168, 0
        %1175 = vmatprep.subr.bf16.mxu0 0
        %1176 = vmatpush1.bf16.msra.mxu0 0
        %1177 = vmatprep.subr.bf16.mxu0 0
        %1178 = vmatpush1.bf16.msra.mxu0 0
        %1179 = vmatprep.subr.bf16.mxu0 0
        %1180 = vmatpush1.bf16.msra.mxu0 0
        %1181 = vmatprep.subr.bf16.mxu0 0
        %1182 = vmatpush1.bf16.msra.mxu0 0
        %1183 = vmatprep.subr.bf16.mxu0 0
        %1184 = vmatpush1.bf16.msra.mxu0 0
        %1185 = vmatprep.subr.bf16.mxu0 0
        %1186 = vmatpush1.bf16.msra.mxu0 0
        %1187 = vmatprep.subr.bf16.mxu0 0
        %1188 = vmatpush1.bf16.msra.mxu0 0
        %1189 = vmatprep.subr.bf16.mxu0 0
        %1190 = vmatpush1.bf16.msra.mxu0 %v1173
        %1191 = vmatprep.subr.bf16.mxu0 0
        %1192 = vmatpush2.bf16.msra.mxu0 0
        %1193 = vmatprep.subr.bf16.mxu0 0
        %1194 = vmatpush2.bf16.msra.mxu0 0
        %1195 = vmatprep.subr.bf16.mxu0 0
        %1196 = vmatpush2.bf16.msra.mxu0 0
        %1197 = vmatprep.subr.bf16.mxu0 0
        %1198 = vmatpush2.bf16.msra.mxu0 0
        %1199 = vmatprep.subr.bf16.mxu0 0
        %1200 = vmatpush2.bf16.msra.mxu0 0
        %1201 = vmatprep.subr.bf16.mxu0 0
        %1202 = vmatpush2.bf16.msra.mxu0 0
        %1203 = vmatprep.subr.bf16.mxu0 0
        %1204 = vmatpush2.bf16.msra.mxu0 0
        %1205 = vmatprep.subr.bf16.mxu0 0
        %1206 = vmatpush2.bf16.msra.mxu0 0
        %1207 = vmatprep.mubr.bf16.mxu0 0
        %1208 = vmatmul.mubr.bf16.gmra.mxu0 %v1170
        %v1209 = vpop.f32.mrf.mxu0
        %v1210 = vadd.f32 0.0, %v1209
        %v1211 = vpop.f32.mrf.mxu0
        %v1212 = vpop.f32.mrf.mxu0
        %v1213 = vpop.f32.mrf.mxu0
        %1214 = vdwg.mxu0
        %1216 = vrot.lane.b32.xlu0 %v990, 8
        %v1217 = vpop.permute.xlu0 %1216
        %1220 = vrot.lane.b32.xlu0 %v1100, 16
        %v1221 = vpop.permute.xlu0 %1220
        %1224 = vrot.lane.b32.xlu0 %v1210, 24
        %v1225 = vpop.permute.xlu0 %1224
        %v1227 = vsel %vm777, %v880, %v1217
        %vm1228 = vcmask 130048
        %v1229 = vsel %vm1228, %v1227, %v1221
        %vm1230 = vcmask 195584
        %v1231 = vsel %vm1230, %v1229, %v1225
        %v1232 = vpack.c.bf16 %v1231, %v1231
        %v1233 = vld [vmem:[#allocation8] sm:$0xf]
        %v1234 = vld [vmem:[#allocation8 + $0x4] sm:$0xf]
        %v1235 = vld [vmem:[#allocation8 + $0x8] sm:$0xf]
        %v1236 = vld [vmem:[#allocation8 + $0xc] sm:$0xf]
        %v1241 = vunpack.c.l.b16 %v1233
        %v1242 = vunpack.c.l.b16 %v1234
        %v1243 = vunpack.c.l.b16 %v1235
        %v1244 = vunpack.c.l.b16 %v1236
        %v1245 = vpack.c.b16 %v1242, %v1241
        %v1246 = vpack.c.b16 %v1244, %v1243
        %1249 = vrot.lane.b32.xlu0 %v715, 32
        %v1250 = vpop.permute.xlu0 %1249
        %v1253 = vsel %vm729, %v1232, 0
        %1255 = vmatprep.subr.bf16.mxu0 0
        %1256 = vmatpush1.bf16.msra.mxu0 0
        %1257 = vmatprep.subr.bf16.mxu0 0
        %1258 = vmatpush1.bf16.msra.mxu0 0
        %1259 = vmatprep.subr.bf16.mxu0 0
        %1260 = vmatpush1.bf16.msra.mxu0 0
        %1261 = vmatprep.subr.bf16.mxu0 0
        %1262 = vmatpush1.bf16.msra.mxu0 0
        %1263 = vmatprep.subr.bf16.mxu0 0
        %1264 = vmatpush1.bf16.msra.mxu0 0
        %1265 = vmatprep.subr.bf16.mxu0 0
        %1266 = vmatpush1.bf16.msra.mxu0 0
        %1267 = vmatprep.subr.bf16.mxu0 0
        %1268 = vmatpush1.bf16.msra.mxu0 %v1246
        %1269 = vmatprep.subr.bf16.mxu0 0
        %1270 = vmatpush1.bf16.msra.mxu0 %v1245
        %1271 = vmatprep.subr.bf16.mxu0 0
        %1272 = vmatpush2.bf16.msra.mxu0 0
        %1273 = vmatprep.subr.bf16.mxu0 0
        %1274 = vmatpush2.bf16.msra.mxu0 0
        %1275 = vmatprep.subr.bf16.mxu0 0
        %1276 = vmatpush2.bf16.msra.mxu0 0
        %1277 = vmatprep.subr.bf16.mxu0 0
        %1278 = vmatpush2.bf16.msra.mxu0 0
        %1279 = vmatprep.subr.bf16.mxu0 0
        %1280 = vmatpush2.bf16.msra.mxu0 0
        %1281 = vmatprep.subr.bf16.mxu0 0
        %1282 = vmatpush2.bf16.msra.mxu0 0
        %1283 = vmatprep.subr.bf16.mxu0 0
        %1284 = vmatpush2.bf16.msra.mxu0 0
        %1285 = vmatprep.subr.bf16.mxu0 0
        %1286 = vmatpush2.bf16.msra.mxu0 0
        %1287 = vmatprep.mubr.bf16.mxu0 0
        %1288 = vmatmul.mubr.bf16.gmra.mxu0 %v1253
        %v1289 = vpop.f32.mrf.mxu0
        %v1290 = vadd.f32 %v1250, %v1289
        %v1291 = vpop.f32.mrf.mxu0
        %v1292 = vpop.f32.mrf.mxu0
        %v1293 = vpop.f32.mrf.mxu0
        %1294 = vdwg.mxu0
        %v1295 = vadd.f32 %v697, %v1290
        %v1296 = vsel %vm729, %v1295, 0.0
        %1297 = vadd.xlane.f32.xlu0 %v1296
        %v1298 = vpop.xlane.xlu0 %1297
        %v1299 = vrcp.pop 32.0
        %v1300 = vmul.f32 %v1298, %v1299
        %v1301 = vsub.f32 %v1295, %v1300
        %v1302 = vmul.f32 %v1301, %v1301
        %v1303 = vsel %vm729, %v1302, 0.0
        %1304 = vadd.xlane.f32.xlu0 %v1303
        %v1305 = vpop.xlane.xlu0 %1304
        %v1306 = vmul.f32 %v1305, %v1299
        %v1307 = vadd.f32 %v1306, 1e-05
        %v1308 = vrsqrt.pop %v1307
        %v1309 = vmul.f32 %v1301, %v1308
        %v1310 = vlaneseq
        %v1311 = vshrl.u32 %v1310, 7
        %v1312 = vsub.s32 0, %v1311
        %v1313 = vrot.slane %v705, %v1312
        %v1314 = vmul.f32 %v1309, %v1313
        %v1315 = vlaneseq
        %v1316 = vshrl.u32 %v1315, 7
        %v1317 = vsub.s32 1, %v1316
        %v1318 = vrot.slane %v705, %v1317
        %v1319 = vadd.f32 %v1314, %v1318
        %v1320 = vpack.c.bf16 %v1319, %v1319
        %v1321 = vld [vmem:[#allocation10] sm:$0xf]
        %v1322 = vld [vmem:[#allocation10 + $0x4] sm:$0xf]
        %v1323 = vld [vmem:[#allocation10 + $0x8] sm:$0xf]
        %v1324 = vld [vmem:[#allocation10 + $0xc] sm:$0xf]
        %v1326 = vlaneseq
        %v1327 = vshrl.u32 %v1326, 7
        %v1328 = vsub.s32 0, %v1327
        %v1329 = vrot.slane %v703, %v1328
        %v1335 = vunpack.c.l.b16 %v1321
        %v1336 = vunpack.c.l.b16 %v1322
        %v1337 = vunpack.c.l.b16 %v1323
        %v1338 = vunpack.c.l.b16 %v1324
        %v1339 = vpack.c.b16 %v1336, %v1335
        %v1340 = vpack.c.b16 %v1338, %v1337
        %v1344 = vsel %vm729, %v1320, 0
        %1346 = vmatprep.subr.bf16.mxu0 0
        %1347 = vmatpush1.bf16.msra.mxu0 0
        %1348 = vmatprep.subr.bf16.mxu0 0
        %1349 = vmatpush1.bf16.msra.mxu0 0
        %1350 = vmatprep.subr.bf16.mxu0 0
        %1351 = vmatpush1.bf16.msra.mxu0 0
        %1352 = vmatprep.subr.bf16.mxu0 0
        %1353 = vmatpush1.bf16.msra.mxu0 0
        %1354 = vmatprep.subr.bf16.mxu0 0
        %1355 = vmatpush1.bf16.msra.mxu0 0
        %1356 = vmatprep.subr.bf16.mxu0 0
        %1357 = vmatpush1.bf16.msra.mxu0 0
        %1358 = vmatprep.subr.bf16.mxu0 0
        %1359 = vmatpush1.bf16.msra.mxu0 %v1340
        %1360 = vmatprep.subr.bf16.mxu0 0
        %1361 = vmatpush1.bf16.msra.mxu0 %v1339
        %1362 = vmatprep.subr.bf16.mxu0 0
        %1363 = vmatpush2.bf16.msra.mxu0 0
        %1364 = vmatprep.subr.bf16.mxu0 0
        %1365 = vmatpush2.bf16.msra.mxu0 0
        %1366 = vmatprep.subr.bf16.mxu0 0
        %1367 = vmatpush2.bf16.msra.mxu0 0
        %1368 = vmatprep.subr.bf16.mxu0 0
        %1369 = vmatpush2.bf16.msra.mxu0 0
        %1370 = vmatprep.subr.bf16.mxu0 0
        %1371 = vmatpush2.bf16.msra.mxu0 0
        %1372 = vmatprep.subr.bf16.mxu0 0
        %1373 = vmatpush2.bf16.msra.mxu0 0
        %1374 = vmatprep.subr.bf16.mxu0 0
        %1375 = vmatpush2.bf16.msra.mxu0 0
        %1376 = vmatprep.subr.bf16.mxu0 0
        %1377 = vmatpush2.bf16.msra.mxu0 0
        %1378 = vmatprep.mubr.bf16.mxu0 0
        %1379 = vmatmul.mubr.bf16.gmra.mxu0 %v1344
        %v1380 = vpop.f32.mrf.mxu0
        %v1381 = vadd.f32 %v1329, %v1380
        %v1382 = vpop.f32.mrf.mxu0
        %v1383 = vpop.f32.mrf.mxu0
        %v1384 = vpop.f32.mrf.mxu0
        %1385 = vdwg.mxu0
        %v1386 = vpack.c.bf16 %v699, %v698
        %v1387 = vld [vmem:[#allocation11] sm:$0xf]
        %v1388 = vld [vmem:[#allocation11 + $0x4] sm:$0xf]
        %v1389 = vld [vmem:[#allocation11 + $0x8] sm:$0xf]
        %v1390 = vld [vmem:[#allocation11 + $0xc] sm:$0xf]
        %v1395 = vunpack.c.l.b16 %v1387
        %v1396 = vunpack.c.l.b16 %v1388
        %v1397 = vunpack.c.l.b16 %v1389
        %v1398 = vunpack.c.l.b16 %v1390
        %v1399 = vpack.c.b16 %v1396, %v1395
        %v1400 = vpack.c.b16 %v1398, %v1397
        %1403 = vrot.lane.b32.xlu0 %v1329, 96
        %v1404 = vpop.permute.xlu0 %1403
        %v1407 = vsel %vm729, %v1386, 0
        %1409 = vmatprep.subr.bf16.mxu0 0
        %1410 = vmatpush1.bf16.msra.mxu0 0
        %1411 = vmatprep.subr.bf16.mxu0 0
        %1412 = vmatpush1.bf16.msra.mxu0 0
        %1413 = vmatprep.subr.bf16.mxu0 0
        %1414 = vmatpush1.bf16.msra.mxu0 0
        %1415 = vmatprep.subr.bf16.mxu0 0
        %1416 = vmatpush1.bf16.msra.mxu0 0
        %1417 = vmatprep.subr.bf16.mxu0 0
        %1418 = vmatpush1.bf16.msra.mxu0 0
        %1419 = vmatprep.subr.bf16.mxu0 0
        %1420 = vmatpush1.bf16.msra.mxu0 0
        %1421 = vmatprep.subr.bf16.mxu0 0
        %1422 = vmatpush1.bf16.msra.mxu0 %v1400
        %1423 = vmatprep.subr.bf16.mxu0 0
        %1424 = vmatpush1.bf16.msra.mxu0 %v1399
        %1425 = vmatprep.subr.bf16.mxu0 0
        %1426 = vmatpush2.bf16.msra.mxu0 0
        %1427 = vmatprep.subr.bf16.mxu0 0
        %1428 = vmatpush2.bf16.msra.mxu0 0
        %1429 = vmatprep.subr.bf16.mxu0 0
        %1430 = vmatpush2.bf16.msra.mxu0 0
        %1431 = vmatprep.subr.bf16.mxu0 0
        %1432 = vmatpush2.bf16.msra.mxu0 0
        %1433 = vmatprep.subr.bf16.mxu0 0
        %1434 = vmatpush2.bf16.msra.mxu0 0
        %1435 = vmatprep.subr.bf16.mxu0 0
        %1436 = vmatpush2.bf16.msra.mxu0 0
        %1437 = vmatprep.subr.bf16.mxu0 0
        %1438 = vmatpush2.bf16.msra.mxu0 0
        %1439 = vmatprep.subr.bf16.mxu0 0
        %1440 = vmatpush2.bf16.msra.mxu0 0
        %1441 = vmatprep.mubr.bf16.mxu0 0
        %1442 = vmatmul.mubr.bf16.gmra.mxu0 %v1407
        %v1443 = vpop.f32.mrf.mxu0
        %v1444 = vadd.f32 %v1404, %v1443
        %v1445 = vpop.f32.mrf.mxu0
        %v1446 = vpop.f32.mrf.mxu0
        %v1447 = vadd.f32 %v1404, %v1446
        %v1448 = vpop.f32.mrf.mxu0
        %1449 = vdwg.mxu0
        %v1450 = vpack.c.bf16 %v1381, %v1381
        %v1451 = vpack.c.bf16 %v1447, %v1444
        %v1453 = vsel %vm777, %v1450, 0
        %v1456 = vsel %vm777, %v1451, 0
        %1458 = vmatprep.subr.bf16.mxu0 0
        %1459 = vmatpush1.bf16.xpose.msra.mxu0 0
        %1460 = vmatprep.subr.bf16.mxu0 0
        %1461 = vmatpush1.bf16.xpose.msra.mxu0 0
        %1462 = vmatprep.subr.bf16.mxu0 0
        %1463 = vmatpush1.bf16.xpose.msra.mxu0 0
        %1464 = vmatprep.subr.bf16.mxu0 0
        %1465 = vmatpush1.bf16.xpose.msra.mxu0 0
        %1466 = vmatprep.subr.bf16.mxu0 0
        %1467 = vmatpush1.bf16.xpose.msra.mxu0 0
        %1468 = vmatprep.subr.bf16.mxu0 0
        %1469 = vmatpush1.bf16.xpose.msra.mxu0 0
        %1470 = vmatprep.subr.bf16.mxu0 0
        %1471 = vmatpush1.bf16.xpose.msra.mxu0 0
        %1472 = vmatprep.subr.bf16.mxu0 0
        %1473 = vmatpush1.bf16.xpose.msra.mxu0 %v1456
        %1474 = vmatprep.subr.bf16.mxu0 0
        %1475 = vmatpush2.bf16.xpose.msra.mxu0 0
        %1476 = vmatprep.subr.bf16.mxu0 0
        %1477 = vmatpush2.bf16.xpose.msra.mxu0 0
        %1478 = vmatprep.subr.bf16.mxu0 0
        %1479 = vmatpush2.bf16.xpose.msra.mxu0 0
        %1480 = vmatprep.subr.bf16.mxu0 0
        %1481 = vmatpush2.bf16.xpose.msra.mxu0 0
        %1482 = vmatprep.subr.bf16.mxu0 0
        %1483 = vmatpush2.bf16.xpose.msra.mxu0 0
        %1484 = vmatprep.subr.bf16.mxu0 0
        %1485 = vmatpush2.bf16.xpose.msra.mxu0 0
        %1486 = vmatprep.subr.bf16.mxu0 0
        %1487 = vmatpush2.bf16.xpose.msra.mxu0 0
        %1488 = vmatprep.subr.bf16.mxu0 0
        %1489 = vmatpush2.bf16.xpose.msra.mxu0 0
        %1490 = vmatprep.mubr.bf16.mxu0 0
        %1491 = vmatmul.mubr.bf16.gmra.mxu0 %v1453
        %v1492 = vpop.f32.mrf.mxu0
        %v1493 = vadd.f32 %v701, %v1492
        %v1494 = vpop.f32.mrf.mxu0
        %v1495 = vpop.f32.mrf.mxu0
        %v1496 = vpop.f32.mrf.mxu0
        %1497 = vdwg.mxu0
        %v1498 = vsel %vm1228, %v1493, -inf
        %1499 = vmax.xlane.f32.xlu0 %v1498
        %v1500 = vpop.xlane.xlu0 %1499
        %v1501 = vsub.f32 %v1493, %v1500
        %v1502 = vmul.f32 %v1501, 1.442695
        %v1503 = vpow.pop %v1502
        %v1504 = vsel %vm1228, %v1503, 0.0
        %1505 = vadd.xlane.f32.xlu0 %v1504
        %v1506 = vpop.xlane.xlu0 %1505
        %v1507 = vrcp.pop %v1506
        %v1508 = vmul.f32 %v1503, %v1507
        %v1509 = vpack.c.bf16 %v1508, %v1508
        %1511 = vrot.lane.b32.xlu0 %v1451, 96
        %v1512 = vpop.permute.xlu0 %1511
        %v1515 = vsel %vm1228, %v1509, 0
        %1517 = vmatprep.subr.bf16.mxu0 0
        %1518 = vmatpush1.bf16.msra.mxu0 0
        %1519 = vmatprep.subr.bf16.mxu0 0
        %1520 = vmatpush1.bf16.msra.mxu0 0
        %1521 = vmatprep.subr.bf16.mxu0 0
        %1522 = vmatpush1.bf16.msra.mxu0 0
        %1523 = vmatprep.subr.bf16.mxu0 0
        %1524 = vmatpush1.bf16.msra.mxu0 0
        %1525 = vmatprep.subr.bf16.mxu0 0
        %1526 = vmatpush1.bf16.msra.mxu0 0
        %1527 = vmatprep.subr.bf16.mxu0 0
        %1528 = vmatpush1.bf16.msra.mxu0 0
        %1529 = vmatprep.subr.bf16.mxu0 0
        %1530 = vmatpush1.bf16.msra.mxu0 0
        %1531 = vmatprep.subr.bf16.mxu0 0
        %1532 = vmatpush1.bf16.msra.mxu0 %v1512
        %1533 = vmatprep.subr.bf16.mxu0 0
        %1534 = vmatpush2.bf16.msra.mxu0 0
        %1535 = vmatprep.subr.bf16.mxu0 0
        %1536 = vmatpush2.bf16.msra.mxu0 0
        %1537 = vmatprep.subr.bf16.mxu0 0
        %1538 = vmatpush2.bf16.msra.mxu0 0
        %1539 = vmatprep.subr.bf16.mxu0 0
        %1540 = vmatpush2.bf16.msra.mxu0 0
        %1541 = vmatprep.subr.bf16.mxu0 0
        %1542 = vmatpush2.bf16.msra.mxu0 0
        %1543 = vmatprep.subr.bf16.mxu0 0
        %1544 = vmatpush2.bf16.msra.mxu0 0
        %1545 = vmatprep.subr.bf16.mxu0 0
        %1546 = vmatpush2.bf16.msra.mxu0 0
        %1547 = vmatprep.subr.bf16.mxu0 0
        %1548 = vmatpush2.bf16.msra.mxu0 0
        %1549 = vmatprep.mubr.bf16.mxu0 0
        %1550 = vmatmul.mubr.bf16.gmra.mxu0 %v1515
        %v1551 = vpop.f32.mrf.mxu0
        %v1552 = vadd.f32 0.0, %v1551
        %v1553 = vpop.f32.mrf.mxu0
        %v1554 = vpop.f32.mrf.mxu0
        %v1555 = vpop.f32.mrf.mxu0
        %1556 = vdwg.mxu0
        %1558 = vrot.lane.b32.xlu0 %v1450, 120
        %v1559 = vpop.permute.xlu0 %1558
        %1560 = vrot.lane.b32.xlu0 %v1451, 120
        %v1561 = vpop.permute.xlu0 %1560
        %v1563 = vsel %vm777, %v1559, 0
        %v1566 = vsel %vm777, %v1561, 0
        %1568 = vmatprep.subr.bf16.mxu0 0
        %1569 = vmatpush1.bf16.xpose.msra.mxu0 0
        %1570 = vmatprep.subr.bf16.mxu0 0
        %1571 = vmatpush1.bf16.xpose.msra.mxu0 0
        %1572 = vmatprep.subr.bf16.mxu0 0
        %1573 = vmatpush1.bf16.xpose.msra.mxu0 0
        %1574 = vmatprep.subr.bf16.mxu0 0
        %1575 = vmatpush1.bf16.xpose.msra.mxu0 0
        %1576 = vmatprep.subr.bf16.mxu0 0
        %1577 = vmatpush1.bf16.xpose.msra.mxu0 0
        %1578 = vmatprep.subr.bf16.mxu0 0
        %1579 = vmatpush1.bf16.xpose.msra.mxu0 0
        %1580 = vmatprep.subr.bf16.mxu0 0
        %1581 = vmatpush1.bf16.xpose.msra.mxu0 0
        %1582 = vmatprep.subr.bf16.mxu0 0
        %1583 = vmatpush1.bf16.xpose.msra.mxu0 %v1566
        %1584 = vmatprep.subr.bf16.mxu0 0
        %1585 = vmatpush2.bf16.xpose.msra.mxu0 0
        %1586 = vmatprep.subr.bf16.mxu0 0
        %1587 = vmatpush2.bf16.xpose.msra.mxu0 0
        %1588 = vmatprep.subr.bf16.mxu0 0
        %1589 = vmatpush2.bf16.xpose.msra.mxu0 0
        %1590 = vmatprep.subr.bf16.mxu0 0
        %1591 = vmatpush2.bf16.xpose.msra.mxu0 0
        %1592 = vmatprep.subr.bf16.mxu0 0
        %1593 = vmatpush2.bf16.xpose.msra.mxu0 0
        %1594 = vmatprep.subr.bf16.mxu0 0
        %1595 = vmatpush2.bf16.xpose.msra.mxu0 0
        %1596 = vmatprep.subr.bf16.mxu0 0
        %1597 = vmatpush2.bf16.xpose.msra.mxu0 0
        %1598 = vmatprep.subr.bf16.mxu0 0
        %1599 = vmatpush2.bf16.xpose.msra.mxu0 0
        %1600 = vmatprep.mubr.bf16.mxu0 0
        %1601 = vmatmul.mubr.bf16.gmra.mxu0 %v1563
        %v1602 = vpop.f32.mrf.mxu0
        %v1603 = vadd.f32 %v701, %v1602
        %v1604 = vpop.f32.mrf.mxu0
        %v1605 = vpop.f32.mrf.mxu0
        %v1606 = vpop.f32.mrf.mxu0
        %1607 = vdwg.mxu0
        %v1608 = vsel %vm1228, %v1603, -inf
        %1609 = vmax.xlane.f32.xlu0 %v1608
        %v1610 = vpop.xlane.xlu0 %1609
        %v1611 = vsub.f32 %v1603, %v1610
        %v1612 = vmul.f32 %v1611, 1.442695
        %v1613 = vpow.pop %v1612
        %v1614 = vsel %vm1228, %v1613, 0.0
        %1615 = vadd.xlane.f32.xlu0 %v1614
        %v1616 = vpop.xlane.xlu0 %1615
        %v1617 = vrcp.pop %v1616
        %v1618 = vmul.f32 %v1613, %v1617
        %v1619 = vpack.c.bf16 %v1618, %v1618
        %1620 = vrot.lane.b32.xlu0 %v1451, 88
        %v1621 = vpop.permute.xlu0 %1620
        %v1624 = vsel %vm1228, %v1619, 0
        %1626 = vmatprep.subr.bf16.mxu0 0
        %1627 = vmatpush1.bf16.msra.mxu0 0
        %1628 = vmatprep.subr.bf16.mxu0 0
        %1629 = vmatpush1.bf16.msra.mxu0 0
        %1630 = vmatprep.subr.bf16.mxu0 0
        %1631 = vmatpush1.bf16.msra.mxu0 0
        %1632 = vmatprep.subr.bf16.mxu0 0
        %1633 = vmatpush1.bf16.msra.mxu0 0
        %1634 = vmatprep.subr.bf16.mxu0 0
        %1635 = vmatpush1.bf16.msra.mxu0 0
        %1636 = vmatprep.subr.bf16.mxu0 0
        %1637 = vmatpush1.bf16.msra.mxu0 0
        %1638 = vmatprep.subr.bf16.mxu0 0
        %1639 = vmatpush1.bf16.msra.mxu0 0
        %1640 = vmatprep.subr.bf16.mxu0 0
        %1641 = vmatpush1.bf16.msra.mxu0 %v1621
        %1642 = vmatprep.subr.bf16.mxu0 0
        %1643 = vmatpush2.bf16.msra.mxu0 0
        %1644 = vmatprep.subr.bf16.mxu0 0
        %1645 = vmatpush2.bf16.msra.mxu0 0
        %1646 = vmatprep.subr.bf16.mxu0 0
        %1647 = vmatpush2.bf16.msra.mxu0 0
        %1648 = vmatprep.subr.bf16.mxu0 0
        %1649 = vmatpush2.bf16.msra.mxu0 0
        %1650 = vmatprep.subr.bf16.mxu0 0
        %1651 = vmatpush2.bf16.msra.mxu0 0
        %1652 = vmatprep.subr.bf16.mxu0 0
        %1653 = vmatpush2.bf16.msra.mxu0 0
        %1654 = vmatprep.subr.bf16.mxu0 0
        %1655 = vmatpush2.bf16.msra.mxu0 0
        %1656 = vmatprep.subr.bf16.mxu0 0
        %1657 = vmatpush2.bf16.msra.mxu0 0
        %1658 = vmatprep.mubr.bf16.mxu0 0
        %1659 = vmatmul.mubr.bf16.gmra.mxu0 %v1624
        %v1660 = vpop.f32.mrf.mxu0
        %v1661 = vadd.f32 0.0, %v1660
        %v1662 = vpop.f32.mrf.mxu0
        %v1663 = vpop.f32.mrf.mxu0
        %v1664 = vpop.f32.mrf.mxu0
        %1665 = vdwg.mxu0
        %1666 = vrot.lane.b32.xlu0 %v1450, 112
        %v1667 = vpop.permute.xlu0 %1666
        %1668 = vrot.lane.b32.xlu0 %v1451, 112
        %v1669 = vpop.permute.xlu0 %1668
        %v1671 = vsel %vm777, %v1667, 0
        %v1674 = vsel %vm777, %v1669, 0
        %1676 = vmatprep.subr.bf16.mxu0 0
        %1677 = vmatpush1.bf16.xpose.msra.mxu0 0
        %1678 = vmatprep.subr.bf16.mxu0 0
        %1679 = vmatpush1.bf16.xpose.msra.mxu0 0
        %1680 = vmatprep.subr.bf16.mxu0 0
        %1681 = vmatpush1.bf16.xpose.msra.mxu0 0
        %1682 = vmatprep.subr.bf16.mxu0 0
        %1683 = vmatpush1.bf16.xpose.msra.mxu0 0
        %1684 = vmatprep.subr.bf16.mxu0 0
        %1685 = vmatpush1.bf16.xpose.msra.mxu0 0
        %1686 = vmatprep.subr.bf16.mxu0 0
        %1687 = vmatpush1.bf16.xpose.msra.mxu0 0
        %1688 = vmatprep.subr.bf16.mxu0 0
        %1689 = vmatpush1.bf16.xpose.msra.mxu0 0
        %1690 = vmatprep.subr.bf16.mxu0 0
        %1691 = vmatpush1.bf16.xpose.msra.mxu0 %v1674
        %1692 = vmatprep.subr.bf16.mxu0 0
        %1693 = vmatpush2.bf16.xpose.msra.mxu0 0
        %1694 = vmatprep.subr.bf16.mxu0 0
        %1695 = vmatpush2.bf16.xpose.msra.mxu0 0
        %1696 = vmatprep.subr.bf16.mxu0 0
        %1697 = vmatpush2.bf16.xpose.msra.mxu0 0
        %1698 = vmatprep.subr.bf16.mxu0 0
        %1699 = vmatpush2.bf16.xpose.msra.mxu0 0
        %1700 = vmatprep.subr.bf16.mxu0 0
        %1701 = vmatpush2.bf16.xpose.msra.mxu0 0
        %1702 = vmatprep.subr.bf16.mxu0 0
        %1703 = vmatpush2.bf16.xpose.msra.mxu0 0
        %1704 = vmatprep.subr.bf16.mxu0 0
        %1705 = vmatpush2.bf16.xpose.msra.mxu0 0
        %1706 = vmatprep.subr.bf16.mxu0 0
        %1707 = vmatpush2.bf16.xpose.msra.mxu0 0
        %1708 = vmatprep.mubr.bf16.mxu0 0
        %1709 = vmatmul.mubr.bf16.gmra.mxu0 %v1671
        %v1710 = vpop.f32.mrf.mxu0
        %v1711 = vadd.f32 %v701, %v1710
        %v1712 = vpop.f32.mrf.mxu0
        %v1713 = vpop.f32.mrf.mxu0
        %v1714 = vpop.f32.mrf.mxu0
        %1715 = vdwg.mxu0
        %v1716 = vsel %vm1228, %v1711, -inf
        %1717 = vmax.xlane.f32.xlu0 %v1716
        %v1718 = vpop.xlane.xlu0 %1717
        %v1719 = vsub.f32 %v1711, %v1718
        %v1720 = vmul.f32 %v1719, 1.442695
        %v1721 = vpow.pop %v1720
        %v1722 = vsel %vm1228, %v1721, 0.0
        %1723 = vadd.xlane.f32.xlu0 %v1722
        %v1724 = vpop.xlane.xlu0 %1723
        %v1725 = vrcp.pop %v1724
        %v1726 = vmul.f32 %v1721, %v1725
        %v1727 = vpack.c.bf16 %v1726, %v1726
        %1728 = vrot.lane.b32.xlu0 %v1451, 80
        %v1729 = vpop.permute.xlu0 %1728
        %v1732 = vsel %vm1228, %v1727, 0
        %1734 = vmatprep.subr.bf16.mxu0 0
        %1735 = vmatpush1.bf16.msra.mxu0 0
        %1736 = vmatprep.subr.bf16.mxu0 0
        %1737 = vmatpush1.bf16.msra.mxu0 0
        %1738 = vmatprep.subr.bf16.mxu0 0
        %1739 = vmatpush1.bf16.msra.mxu0 0
        %1740 = vmatprep.subr.bf16.mxu0 0
        %1741 = vmatpush1.bf16.msra.mxu0 0
        %1742 = vmatprep.subr.bf16.mxu0 0
        %1743 = vmatpush1.bf16.msra.mxu0 0
        %1744 = vmatprep.subr.bf16.mxu0 0
        %1745 = vmatpush1.bf16.msra.mxu0 0
        %1746 = vmatprep.subr.bf16.mxu0 0
        %1747 = vmatpush1.bf16.msra.mxu0 0
        %1748 = vmatprep.subr.bf16.mxu0 0
        %1749 = vmatpush1.bf16.msra.mxu0 %v1729
        %1750 = vmatprep.subr.bf16.mxu0 0
        %1751 = vmatpush2.bf16.msra.mxu0 0
        %1752 = vmatprep.subr.bf16.mxu0 0
        %1753 = vmatpush2.bf16.msra.mxu0 0
        %1754 = vmatprep.subr.bf16.mxu0 0
        %1755 = vmatpush2.bf16.msra.mxu0 0
        %1756 = vmatprep.subr.bf16.mxu0 0
        %1757 = vmatpush2.bf16.msra.mxu0 0
        %1758 = vmatprep.subr.bf16.mxu0 0
        %1759 = vmatpush2.bf16.msra.mxu0 0
        %1760 = vmatprep.subr.bf16.mxu0 0
        %1761 = vmatpush2.bf16.msra.mxu0 0
        %1762 = vmatprep.subr.bf16.mxu0 0
        %1763 = vmatpush2.bf16.msra.mxu0 0
        %1764 = vmatprep.subr.bf16.mxu0 0
        %1765 = vmatpush2.bf16.msra.mxu0 0
        %1766 = vmatprep.mubr.bf16.mxu0 0
        %1767 = vmatmul.mubr.bf16.gmra.mxu0 %v1732
        %v1768 = vpop.f32.mrf.mxu0
        %v1769 = vadd.f32 0.0, %v1768
        %v1770 = vpop.f32.mrf.mxu0
        %v1771 = vpop.f32.mrf.mxu0
        %v1772 = vpop.f32.mrf.mxu0
        %1773 = vdwg.mxu0
        %1774 = vrot.lane.b32.xlu0 %v1450, 104
        %v1775 = vpop.permute.xlu0 %1774
        %1776 = vrot.lane.b32.xlu0 %v1451, 104
        %v1777 = vpop.permute.xlu0 %1776
        %v1779 = vsel %vm777, %v1775, 0
        %v1782 = vsel %vm777, %v1777, 0
        %1784 = vmatprep.subr.bf16.mxu0 0
        %1785 = vmatpush1.bf16.xpose.msra.mxu0 0
        %1786 = vmatprep.subr.bf16.mxu0 0
        %1787 = vmatpush1.bf16.xpose.msra.mxu0 0
        %1788 = vmatprep.subr.bf16.mxu0 0
        %1789 = vmatpush1.bf16.xpose.msra.mxu0 0
        %1790 = vmatprep.subr.bf16.mxu0 0
        %1791 = vmatpush1.bf16.xpose.msra.mxu0 0
        %1792 = vmatprep.subr.bf16.mxu0 0
        %1793 = vmatpush1.bf16.xpose.msra.mxu0 0
        %1794 = vmatprep.subr.bf16.mxu0 0
        %1795 = vmatpush1.bf16.xpose.msra.mxu0 0
        %1796 = vmatprep.subr.bf16.mxu0 0
        %1797 = vmatpush1.bf16.xpose.msra.mxu0 0
        %1798 = vmatprep.subr.bf16.mxu0 0
        %1799 = vmatpush1.bf16.xpose.msra.mxu0 %v1782
        %1800 = vmatprep.subr.bf16.mxu0 0
        %1801 = vmatpush2.bf16.xpose.msra.mxu0 0
        %1802 = vmatprep.subr.bf16.mxu0 0
        %1803 = vmatpush2.bf16.xpose.msra.mxu0 0
        %1804 = vmatprep.subr.bf16.mxu0 0
        %1805 = vmatpush2.bf16.xpose.msra.mxu0 0
        %1806 = vmatprep.subr.bf16.mxu0 0
        %1807 = vmatpush2.bf16.xpose.msra.mxu0 0
        %1808 = vmatprep.subr.bf16.mxu0 0
        %1809 = vmatpush2.bf16.xpose.msra.mxu0 0
        %1810 = vmatprep.subr.bf16.mxu0 0
        %1811 = vmatpush2.bf16.xpose.msra.mxu0 0
        %1812 = vmatprep.subr.bf16.mxu0 0
        %1813 = vmatpush2.bf16.xpose.msra.mxu0 0
        %1814 = vmatprep.subr.bf16.mxu0 0
        %1815 = vmatpush2.bf16.xpose.msra.mxu0 0
        %1816 = vmatprep.mubr.bf16.mxu0 0
        %1817 = vmatmul.mubr.bf16.gmra.mxu0 %v1779
        %v1818 = vpop.f32.mrf.mxu0
        %v1819 = vadd.f32 %v701, %v1818
        %v1820 = vpop.f32.mrf.mxu0
        %v1821 = vpop.f32.mrf.mxu0
        %v1822 = vpop.f32.mrf.mxu0
        %1823 = vdwg.mxu0
        %v1824 = vsel %vm1228, %v1819, -inf
        %1825 = vmax.xlane.f32.xlu0 %v1824
        %v1826 = vpop.xlane.xlu0 %1825
        %v1827 = vsub.f32 %v1819, %v1826
        %v1828 = vmul.f32 %v1827, 1.442695
        %v1829 = vpow.pop %v1828
        %v1830 = vsel %vm1228, %v1829, 0.0
        %1831 = vadd.xlane.f32.xlu0 %v1830
        %v1832 = vpop.xlane.xlu0 %1831
        %v1833 = vrcp.pop %v1832
        %v1834 = vmul.f32 %v1829, %v1833
        %v1835 = vpack.c.bf16 %v1834, %v1834
        %1836 = vrot.lane.b32.xlu0 %v1451, 72
        %v1837 = vpop.permute.xlu0 %1836
        %v1840 = vsel %vm1228, %v1835, 0
        %1842 = vmatprep.subr.bf16.mxu0 0
        %1843 = vmatpush1.bf16.msra.mxu0 0
        %1844 = vmatprep.subr.bf16.mxu0 0
        %1845 = vmatpush1.bf16.msra.mxu0 0
        %1846 = vmatprep.subr.bf16.mxu0 0
        %1847 = vmatpush1.bf16.msra.mxu0 0
        %1848 = vmatprep.subr.bf16.mxu0 0
        %1849 = vmatpush1.bf16.msra.mxu0 0
        %1850 = vmatprep.subr.bf16.mxu0 0
        %1851 = vmatpush1.bf16.msra.mxu0 0
        %1852 = vmatprep.subr.bf16.mxu0 0
        %1853 = vmatpush1.bf16.msra.mxu0 0
        %1854 = vmatprep.subr.bf16.mxu0 0
        %1855 = vmatpush1.bf16.msra.mxu0 0
        %1856 = vmatprep.subr.bf16.mxu0 0
        %1857 = vmatpush1.bf16.msra.mxu0 %v1837
        %1858 = vmatprep.subr.bf16.mxu0 0
        %1859 = vmatpush2.bf16.msra.mxu0 0
        %1860 = vmatprep.subr.bf16.mxu0 0
        %1861 = vmatpush2.bf16.msra.mxu0 0
        %1862 = vmatprep.subr.bf16.mxu0 0
        %1863 = vmatpush2.bf16.msra.mxu0 0
        %1864 = vmatprep.subr.bf16.mxu0 0
        %1865 = vmatpush2.bf16.msra.mxu0 0
        %1866 = vmatprep.subr.bf16.mxu0 0
        %1867 = vmatpush2.bf16.msra.mxu0 0
        %1868 = vmatprep.subr.bf16.mxu0 0
        %1869 = vmatpush2.bf16.msra.mxu0 0
        %1870 = vmatprep.subr.bf16.mxu0 0
        %1871 = vmatpush2.bf16.msra.mxu0 0
        %1872 = vmatprep.subr.bf16.mxu0 0
        %1873 = vmatpush2.bf16.msra.mxu0 0
        %1874 = vmatprep.mubr.bf16.mxu0 0
        %1875 = vmatmul.mubr.bf16.gmra.mxu0 %v1840
        %v1876 = vpop.f32.mrf.mxu0
        %v1877 = vadd.f32 0.0, %v1876
        %v1878 = vpop.f32.mrf.mxu0
        %v1879 = vpop.f32.mrf.mxu0
        %v1880 = vpop.f32.mrf.mxu0
        %1881 = vdwg.mxu0
        %1883 = vrot.lane.b32.xlu0 %v1661, 8
        %v1884 = vpop.permute.xlu0 %1883
        %1887 = vrot.lane.b32.xlu0 %v1769, 16
        %v1888 = vpop.permute.xlu0 %1887
        %1891 = vrot.lane.b32.xlu0 %v1877, 24
        %v1892 = vpop.permute.xlu0 %1891
        %v1894 = vsel %vm777, %v1552, %v1884
        %v1895 = vsel %vm1228, %v1894, %v1888
        %v1896 = vsel %vm1230, %v1895, %v1892
        %v1897 = vpack.c.bf16 %v1896, %v1896
        %v1898 = vld [vmem:[#allocation13] sm:$0xf]
        %v1899 = vld [vmem:[#allocation13 + $0x4] sm:$0xf]
        %v1900 = vld [vmem:[#allocation13 + $0x8] sm:$0xf]
        %v1901 = vld [vmem:[#allocation13 + $0xc] sm:$0xf]
        %v1906 = vunpack.c.l.b16 %v1898
        %v1907 = vunpack.c.l.b16 %v1899
        %v1908 = vunpack.c.l.b16 %v1900
        %v1909 = vunpack.c.l.b16 %v1901
        %v1910 = vpack.c.b16 %v1907, %v1906
        %v1911 = vpack.c.b16 %v1909, %v1908
        %1914 = vrot.lane.b32.xlu0 %v1329, 32
        %v1915 = vpop.permute.xlu0 %1914
        %v1918 = vsel %vm729, %v1897, 0
        %1920 = vmatprep.subr.bf16.mxu0 0
        %1921 = vmatpush1.bf16.msra.mxu0 0
        %1922 = vmatprep.subr.bf16.mxu0 0
        %1923 = vmatpush1.bf16.msra.mxu0 0
        %1924 = vmatprep.subr.bf16.mxu0 0
        %1925 = vmatpush1.bf16.msra.mxu0 0
        %1926 = vmatprep.subr.bf16.mxu0 0
        %1927 = vmatpush1.bf16.msra.mxu0 0
        %1928 = vmatprep.subr.bf16.mxu0 0
        %1929 = vmatpush1.bf16.msra.mxu0 0
        %1930 = vmatprep.subr.bf16.mxu0 0
        %1931 = vmatpush1.bf16.msra.mxu0 0
        %1932 = vmatprep.subr.bf16.mxu0 0
        %1933 = vmatpush1.bf16.msra.mxu0 %v1911
        %1934 = vmatprep.subr.bf16.mxu0 0
        %1935 = vmatpush1.bf16.msra.mxu0 %v1910
        %1936 = vmatprep.subr.bf16.mxu0 0
        %1937 = vmatpush2.bf16.msra.mxu0 0
        %1938 = vmatprep.subr.bf16.mxu0 0
        %1939 = vmatpush2.bf16.msra.mxu0 0
        %1940 = vmatprep.subr.bf16.mxu0 0
        %1941 = vmatpush2.bf16.msra.mxu0 0
        %1942 = vmatprep.subr.bf16.mxu0 0
        %1943 = vmatpush2.bf16.msra.mxu0 0
        %1944 = vmatprep.subr.bf16.mxu0 0
        %1945 = vmatpush2.bf16.msra.mxu0 0
        %1946 = vmatprep.subr.bf16.mxu0 0
        %1947 = vmatpush2.bf16.msra.mxu0 0
        %1948 = vmatprep.subr.bf16.mxu0 0
        %1949 = vmatpush2.bf16.msra.mxu0 0
        %1950 = vmatprep.subr.bf16.mxu0 0
        %1951 = vmatpush2.bf16.msra.mxu0 0
        %1952 = vmatprep.mubr.bf16.mxu0 0
        %1953 = vmatmul.mubr.bf16.gmra.mxu0 %v1918
        %v1954 = vpop.f32.mrf.mxu0
        %v1955 = vadd.f32 %v1915, %v1954
        %v1956 = vpop.f32.mrf.mxu0
        %v1957 = vpop.f32.mrf.mxu0
        %v1958 = vpop.f32.mrf.mxu0
        %1959 = vdwg.mxu0
        %v1960 = vadd.f32 %v1319, %v1955
        %v1961 = vsel %vm729, %v1960, 0.0
        %1962 = vadd.xlane.f32.xlu0 %v1961
        %v1963 = vpop.xlane.xlu0 %1962
        %v1964 = vmul.f32 %v1963, %v1299
        %v1965 = vsub.f32 %v1960, %v1964
        %v1966 = vmul.f32 %v1965, %v1965
        %v1967 = vsel %vm729, %v1966, 0.0
        %1968 = vadd.xlane.f32.xlu0 %v1967
        %v1969 = vpop.xlane.xlu0 %1968
        %v1970 = vmul.f32 %v1969, %v1299
        %v1971 = vadd.f32 %v1970, 1e-05
        %v1972 = vrsqrt.pop %v1971
        %v1973 = vmul.f32 %v1965, %v1972
        %v1974 = vlaneseq
        %v1975 = vshrl.u32 %v1974, 7
        %v1976 = vsub.s32 2, %v1975
        %v1977 = vrot.slane %v705, %v1976
        %v1978 = vmul.f32 %v1973, %v1977
        %v1979 = vlaneseq
        %v1980 = vshrl.u32 %v1979, 7
        %v1981 = vsub.s32 3, %v1980
        %v1982 = vrot.slane %v705, %v1981
        %v1983 = vadd.f32 %v1978, %v1982
        %v1984 = vpack.c.bf16 %v1983, %v1983
        %v1985 = vld [vmem:[#allocation14] sm:$0xf]
        %v1986 = vld [vmem:[#allocation14 + $0x4] sm:$0xf]
        %v1987 = vld [vmem:[#allocation14 + $0x8] sm:$0xf]
        %v1988 = vld [vmem:[#allocation14 + $0xc] sm:$0xf]
        %v1990 = vlaneseq
        %v1991 = vshrl.u32 %v1990, 7
        %v1992 = vsub.s32 0, %v1991
        %v1993 = vrot.slane %v704, %v1992
        %v1999 = vunpack.c.l.b16 %v1985
        %v2000 = vunpack.c.l.b16 %v1986
        %v2001 = vunpack.c.l.b16 %v1987
        %v2002 = vunpack.c.l.b16 %v1988
        %v2003 = vpack.c.b16 %v2000, %v1999
        %v2004 = vpack.c.b16 %v2002, %v2001
        %v2008 = vsel %vm729, %v1984, 0
        %2010 = vmatprep.subr.bf16.mxu0 0
        %2011 = vmatpush1.bf16.msra.mxu0 0
        %2012 = vmatprep.subr.bf16.mxu0 0
        %2013 = vmatpush1.bf16.msra.mxu0 0
        %2014 = vmatprep.subr.bf16.mxu0 0
        %2015 = vmatpush1.bf16.msra.mxu0 0
        %2016 = vmatprep.subr.bf16.mxu0 0
        %2017 = vmatpush1.bf16.msra.mxu0 0
        %2018 = vmatprep.subr.bf16.mxu0 0
        %2019 = vmatpush1.bf16.msra.mxu0 0
        %2020 = vmatprep.subr.bf16.mxu0 0
        %2021 = vmatpush1.bf16.msra.mxu0 0
        %2022 = vmatprep.subr.bf16.mxu0 0
        %2023 = vmatpush1.bf16.msra.mxu0 %v2004
        %2024 = vmatprep.subr.bf16.mxu0 0
        %2025 = vmatpush1.bf16.msra.mxu0 %v2003
        %2026 = vmatprep.subr.bf16.mxu0 0
        %2027 = vmatpush2.bf16.msra.mxu0 0
        %2028 = vmatprep.subr.bf16.mxu0 0
        %2029 = vmatpush2.bf16.msra.mxu0 0
        %2030 = vmatprep.subr.bf16.mxu0 0
        %2031 = vmatpush2.bf16.msra.mxu0 0
        %2032 = vmatprep.subr.bf16.mxu0 0
        %2033 = vmatpush2.bf16.msra.mxu0 0
        %2034 = vmatprep.subr.bf16.mxu0 0
        %2035 = vmatpush2.bf16.msra.mxu0 0
        %2036 = vmatprep.subr.bf16.mxu0 0
        %2037 = vmatpush2.bf16.msra.mxu0 0
        %2038 = vmatprep.subr.bf16.mxu0 0
        %2039 = vmatpush2.bf16.msra.mxu0 0
        %2040 = vmatprep.subr.bf16.mxu0 0
        %2041 = vmatpush2.bf16.msra.mxu0 0
        %2042 = vmatprep.mubr.bf16.mxu0 0
        %2043 = vmatmul.mubr.bf16.gmra.mxu0 %v2008
        %v2044 = vpop.f32.mrf.mxu0
        %v2045 = vadd.f32 %v1993, %v2044
        %v2046 = vpop.f32.mrf.mxu0
        %v2047 = vpop.f32.mrf.mxu0
        %v2048 = vpop.f32.mrf.mxu0
        %2049 = vdwg.mxu0
        %v2050 = vmul.f32 %v2045, 0.5
        %v2051 = vmul.f32 %v2045, 0.70710677
        %vm2052 = vcmp.ge.f32.partialorder %v2051, 0.0
        %v2053 = vsel %vm2052, 1.0, -1.0
        %v2054 = vand.u32 2147483647, %v2051
        %v2055 = vmul.f32 %v2054, 0.3275911
        %v2056 = vadd.f32 %v2055, 1.0
        %v2057 = vrcp.pop %v2056
        %v2058 = vmul.f32 1.0, %v2057
        %v2059 = vmul.f32 %v2058, 1.0614054
        %v2060 = vadd.f32 %v2059, -1.4531521
        %v2061 = vmul.f32 %v2060, %v2058
        %v2062 = vadd.f32 %v2061, 1.4214138
        %v2063 = vmul.f32 %v2062, %v2058
        %v2064 = vadd.f32 %v2063, -0.28449672
        %v2065 = vmul.f32 %v2064, %v2058
        %v2066 = vadd.f32 %v2065, 0.2548296
        %v2067 = vmul.f32 %v2066, %v2058
        %v2068 = vsub.f32 0.0, %v2054
        %v2069 = vmul.f32 %v2068, %v2054
        %v2070 = vmul.f32 %v2069, 1.442695
        %v2071 = vpow.pop %v2070
        %v2072 = vmul.f32 %v2067, %v2071
        %v2073 = vsub.f32 1.0, %v2072
        %v2074 = vmul.f32 %v2053, %v2073
        %v2075 = vadd.f32 %v2074, 1.0
        %v2076 = vmul.f32 %v2050, %v2075
        %v2077 = vpack.c.bf16 %v2076, %v2076
        %v2078 = vld [vmem:[%s10] sm:$0xf]
        %v2079 = vld [vmem:[%s10 + $0x4] sm:$0xf]
        %v2080 = vld [vmem:[%s10 + $0x8] sm:$0xf]
        %v2081 = vld [vmem:[%s10 + $0xc] sm:$0xf]
        %v2082 = vld [vmem:[%s10 + $0x10] sm:$0xf]
        %v2083 = vld [vmem:[%s10 + $0x14] sm:$0xf]
        %v2084 = vld [vmem:[%s10 + $0x18] sm:$0xf]
        %v2085 = vld [vmem:[%s10 + $0x1c] sm:$0xf]
        %v2094 = vunpack.c.l.b16 %v2078
        %v2095 = vunpack.c.l.b16 %v2079
        %v2096 = vunpack.c.l.b16 %v2080
        %v2097 = vunpack.c.l.b16 %v2081
        %v2098 = vunpack.c.l.b16 %v2082
        %v2099 = vunpack.c.l.b16 %v2083
        %v2100 = vunpack.c.l.b16 %v2084
        %v2101 = vunpack.c.l.b16 %v2085
        %v2102 = vpack.c.b16 %v2095, %v2094
        %v2103 = vpack.c.b16 %v2097, %v2096
        %v2104 = vpack.c.b16 %v2099, %v2098
        %v2105 = vpack.c.b16 %v2101, %v2100
        %2110 = vrot.lane.b32.xlu0 %v1993, 64
        %v2111 = vpop.permute.xlu0 %2110
        %vm2113 = vcmask 523264
        %v2115 = vsel %vm2113, %v2077, 0
        %2117 = vmatprep.subr.bf16.mxu0 0
        %2118 = vmatpush1.bf16.msra.mxu0 0
        %2119 = vmatprep.subr.bf16.mxu0 0
        %2120 = vmatpush1.bf16.msra.mxu0 0
        %2121 = vmatprep.subr.bf16.mxu0 0
        %2122 = vmatpush1.bf16.msra.mxu0 0
        %2123 = vmatprep.subr.bf16.mxu0 0
        %2124 = vmatpush1.bf16.msra.mxu0 0
        %2125 = vmatprep.subr.bf16.mxu0 0
        %2126 = vmatpush1.bf16.msra.mxu0 %v2105
        %2127 = vmatprep.subr.bf16.mxu0 0
        %2128 = vmatpush1.bf16.msra.mxu0 %v2104
        %2129 = vmatprep.subr.bf16.mxu0 0
        %2130 = vmatpush1.bf16.msra.mxu0 %v2103
        %2131 = vmatprep.subr.bf16.mxu0 0
        %2132 = vmatpush1.bf16.msra.mxu0 %v2102
        %2133 = vmatprep.subr.bf16.mxu0 0
        %2134 = vmatpush2.bf16.msra.mxu0 0
        %2135 = vmatprep.subr.bf16.mxu0 0
        %2136 = vmatpush2.bf16.msra.mxu0 0
        %2137 = vmatprep.subr.bf16.mxu0 0
        %2138 = vmatpush2.bf16.msra.mxu0 0
        %2139 = vmatprep.subr.bf16.mxu0 0
        %2140 = vmatpush2.bf16.msra.mxu0 0
        %2141 = vmatprep.subr.bf16.mxu0 0
        %2142 = vmatpush2.bf16.msra.mxu0 0
        %2143 = vmatprep.subr.bf16.mxu0 0
        %2144 = vmatpush2.bf16.msra.mxu0 0
        %2145 = vmatprep.subr.bf16.mxu0 0
        %2146 = vmatpush2.bf16.msra.mxu0 0
        %2147 = vmatprep.subr.bf16.mxu0 0
        %2148 = vmatpush2.bf16.msra.mxu0 0
        %2149 = vmatprep.mubr.bf16.mxu0 0
        %2150 = vmatmul.mubr.bf16.gmra.mxu0 %v2115
        %v2151 = vpop.f32.mrf.mxu0
        %v2152 = vadd.f32 %v2111, %v2151
        %v2153 = vpop.f32.mrf.mxu0
        %v2154 = vpop.f32.mrf.mxu0
        %v2155 = vpop.f32.mrf.mxu0
        %2156 = vdwg.mxu0
        %v2157 = vadd.f32 %v1983, %v2152
        %v2158 = vsel %vm729, %v2157, 0.0
        %2159 = vadd.xlane.f32.xlu0 %v2158
        %v2160 = vpop.xlane.xlu0 %2159
        %v2161 = vmul.f32 %v2160, %v1299
        %v2162 = vsub.f32 %v2157, %v2161
        %v2163 = vmul.f32 %v2162, %v2162
        %v2164 = vsel %vm729, %v2163, 0.0
        %2165 = vadd.xlane.f32.xlu0 %v2164
        %v2166 = vpop.xlane.xlu0 %2165
        %v2167 = vmul.f32 %v2166, %v1299
        %v2168 = vadd.f32 %v2167, 1e-05
        %v2169 = vrsqrt.pop %v2168
        %v2170 = vmul.f32 %v2162, %v2169
        %v2171 = vlaneseq
        %v2172 = vshrl.u32 %v2171, 7
        %v2173 = vsub.s32 4, %v2172
        %v2174 = vrot.slane %v705, %v2173
        %v2175 = vmul.f32 %v2170, %v2174
        %v2176 = vlaneseq
        %v2177 = vshrl.u32 %v2176, 7
        %v2178 = vsub.s32 5, %v2177
        %v2179 = vrot.slane %v705, %v2178
        %v2180 = vadd.f32 %v2175, %v2179
        %2181 = vst.msk [vmem:[%s686] sm:$0xff] %vm729, %v2180
        %s2182 = sand.u32 %s382, 1
        %s2183 = scalar_lea.sflag [#allocation4], %s2182
        %s2184 = sand.u32 %s382, 1
        %s2185 = smul.addr %s2184, 8
        %s2186 = scalar_lea.vmem [#allocation19], %s2185
        // Predicated region
        $region121: #{tpu_custom_call.1} parent=79 // pred_check
          %p2187 = pneg %p392
        $region122: #{tpu_custom_call.1} parent=79 // pred_check_branch
          %2189 = sbr.rel (%p2187) target = $region124
        $region123: #{tpu_custom_call.1} parent=79 // pred_region
          %s2191 = ssub.s32 128, 128
          %2192 = vsyncadd %s2183, %s2191
          %s2193 = smul.addr %s39, 128
          %s2194 = scalar_lea.hbm %s15, %s2193
          %s2196 = sshll.u32 %s2186, 4
          %s2197 = int_to_ptr.vmem [resolvable:$true] %s2196
          %2199 = dma.vmem_to_hbm [thread:$0]  %s2197, 128, %s2194, %s2183
        $region124: #{tpu_custom_call.1} parent=79 // pred_fallthru
          _
      $region80: #{tpu_custom_call.1} parent=5 // pred_fallthru
        _
      %p2200 = scmp.le.s32.totalorder 2, %s34
      // Predicated region
      $region125: #{tpu_custom_call.1} parent=5 // pred_check
        %p2201 = pneg %p2200
      $region126: #{tpu_custom_call.1} parent=5 // pred_check_branch
        %2203 = sbr.rel (%p2201) target = $region128
      $region127: #{tpu_custom_call.1} parent=5 // pred_region
        %s2204 = ssub.s32 %s34, 2
        // Predicated region
        $region129: #{tpu_custom_call.1} parent=127 // pred_check
          %p2205 = pneg %p398
        $region130: #{tpu_custom_call.1} parent=127 // pred_check_branch
          %2207 = sbr.rel (%p2205) target = $region132
        $region131: #{tpu_custom_call.1} parent=127 // pred_region
          %s2208 = sand.u32 %s383, 1
          %s2209 = scalar_lea.sflag [#allocation4], %s2208
          %s2210 = sand.u32 %s383, 1
          %s2211 = smul.addr %s2210, 8
          %s2212 = scalar_lea.vmem [#allocation19], %s2211
          %2213 = dma.done %s2209, 128
        $region132: #{tpu_custom_call.1} parent=127 // pred_fallthru
          _
      $region128: #{tpu_custom_call.1} parent=5 // pred_fallthru
        _
    $region6: #{tpu_custom_call.1} parent=1 // loop_footer
      %s38 = sadd.s32 1, %s34
    $region7: #{tpu_custom_call.1} parent=1 // loop_footer_branch
      %33 = sbr.rel target = $region3
    $region8: #{tpu_custom_call.1} parent=1 // loop_exit
      _
    %2214 = vsyncpa [#allocation3], 1
    %s2215 = scalar_lea.sflag [#allocation3], 1
    %2216 = vsyncpa %s2215, 1
    %2217 = vsyncpa [#allocation6], 1
    %s2218 = scalar_lea.sflag [#allocation6], 1
    %2219 = vsyncpa %s2218, 1
    %2220 = vsyncpa [#allocation9], 1
    %2221 = vsyncpa [#allocation12], 1
    %2222 = vsyncpa [#allocation15], 1
    %2223 = vsyncpa [#allocation18], 1
    %2224 = vsyncpa [#allocation4], 1
    %s2225 = scalar_lea.sflag [#allocation4], 1
    %2226 = vsyncpa %s2225, 1

</llo_original>
